<compile_context>
chip_gen: v7x
topology: tpu7x:2x2x1
jax: 0.10.0
libtpu: 0.0.40
codegen_flags: <defaults>
</compile_context>

<pallas_src>
import math
import functools

import numpy as np
import jax
import jax.numpy as jnp
from jax import lax
from jax.experimental import pallas as pl
from jax.experimental.pallas import tpu as pltpu

_LANES = 128
_SUBLANES = 8


def _tpu_caps():
    """Best-effort (vmem_capacity_bytes, has_two_tensorcores) with safe fallbacks."""
    vmem = 64 * 1024 * 1024                      # safe on every generation (v7x physical)
    try:
        info = pltpu.get_tpu_info()
        vmem = int(getattr(info, "vmem_capacity_bytes", vmem))
    except Exception:
        pass
    two_tc = False
    try:
        two_tc = "v7" in jax.devices()[0].device_kind.lower()
    except Exception:
        pass
    return vmem, two_tc


def _to_grid_kernel(bi_ref, bf_ref, lane_x_ref, lane_dy_ref,
                    seg_ref, dist_ref, val_ref, *, n_boxes, k, unroll):
    """One H-tile (tG packed group-rows) of all channels of the three grids.

    bi_ref      : SMEM int32   (N*9,) = [x0,y0,x1,y1,cx,cy,cid,gc,lc] per box
    bf_ref      : SMEM float32 (N*3,) = [1/max_dist, cx_f, cy_f] per box
    lane_x_ref  : VMEM int32   (1, Wk) lane -> image x
    lane_dy_ref : VMEM int32   (1, Wk) lane -> image row offset within a group
    seg/dist/val: VMEM float32 (C, tG, Wk) output blocks
    """
    C, tG, Wk = seg_ref.shape
    g0 = pl.program_id(0) * tG
    y_lo = g0 * k                 # first image row covered by this tile
    y_hi = (g0 + tG) * k          # one past the last image row of this tile

    # Hoisted per-tile coordinates (packed layout: y = group*k + lane_dy, x = lane_x).
    sub = lax.broadcasted_iota(jnp.int32, (tG, Wk), 0)
    xx = jnp.broadcast_to(lane_x_ref[...], (tG, Wk))
    yy = (g0 + sub) * k + jnp.broadcast_to(lane_dy_ref[...], (tG, Wk))
    xxf = xx.astype(jnp.float32)
    yyf = yy.astype(jnp.float32)
    lane = lax.broadcasted_iota(jnp.int32, (1, Wk), 1)

    # Init: channel 0 of seg = 1 (background); channels [1, C) of all grids = 0.
    # dist[0] / val[0] are written once from the loop carry -> no init needed.
    seg_ref[0] = jnp.ones((tG, Wk), jnp.float32)
    if C > 1:
        zeros_rest = jnp.zeros((C - 1, tG, Wk), jnp.float32)
        seg_ref[pl.ds(1, C - 1)] = zeros_rest
        val_ref[pl.ds(1, C - 1)] = zeros_rest
        dist_ref[pl.ds(1, C - 1)] = zeros_rest

    def body(b, d0):
        base = b * 9
        x0 = bi_ref[base + 0]
        y0 = bi_ref[base + 1]
        x1 = bi_ref[base + 2]
        y1 = bi_ref[base + 3]
        cx = bi_ref[base + 4]
        cy = bi_ref[base + 5]
        cid = bi_ref[base + 6]
        gc = bi_ref[base + 7]
        lc = bi_ref[base + 8]
        inv_md = bf_ref[b * 3 + 0]
        cxf = bf_ref[b * 3 + 1]
        cyf = bf_ref[b * 3 + 2]

        inside = (xx >= x0) & (xx < x1) & (yy >= y0) & (yy < y1)
        is_cent = (xx == cx) & (yy == cy)
        dx = xxf - cxf
        dy = yyf - cyf
        dist = jnp.sqrt(dx * dx + dy * dy)              # EUP
        norm = jnp.minimum(dist * inv_md, 1.0)          # scalar reciprocal, no divide
        pen = jnp.where(is_cent, 1.0, norm)             # penalty_weights[cy, cx] = 1
        vb = jnp.where(inside, pen, 0.0)                # penalty * bbox mask

        # Channel-0 contributions accumulate in the loop carry (no per-box ref RMW).
        d0 = jnp.maximum(d0, vb)

        # Dynamic-channel updates only when the box's rows intersect this tile.
        @pl.when((y1 > y_lo) & (y0 < y_hi))
        def _():
            dist_ref[cid] = jnp.maximum(dist_ref[cid], vb)
            val_ref[cid] = jnp.where(inside, 1.0, val_ref[cid])

        # Center-point seg grid: single (1, Wk) row RMW instead of full-block selects.
        @pl.when((gc >= g0) & (gc < g0 + tG))
        def _():
            iy = gc - g0
            hit = lane == lc
            r0 = seg_ref[0, pl.ds(iy, 1), :]
            seg_ref[0, pl.ds(iy, 1), :] = jnp.where(hit, 0.0, r0)
            rc = seg_ref[cid, pl.ds(iy, 1), :]
            seg_ref[cid, pl.ds(iy, 1), :] = jnp.where(hit, 1.0, rc)

        return d0

    d0 = jnp.zeros((tG, Wk), jnp.float32)
    if n_boxes > 0:
        d0 = lax.fori_loop(0, n_boxes, body, d0, unroll=unroll)

    # vb > 0  <=>  pixel inside some box (pen > 0 everywhere), so d0 also gives the
    # "any box covers this pixel" mask needed for val[0].
    val_ref[0] = jnp.where(d0 > 0.0, 0.0, 1.0)
    # distance penalty grid fixup: grid[grid == 0] = 1 (fused for channel 0).
    dist_ref[0] = jnp.where(d0 == 0.0, 1.0, d0)
    if C > 1:
        rest = dist_ref[pl.ds(1, C - 1)]
        dist_ref[pl.ds(1, C - 1)] = jnp.where(rest == 0.0, 1.0, rest)


def to_grid_forward(img, boxes, labels, *, n_classes, scale_factor):
    """JAX/Pallas equivalent of ToGrid.forward(img, labels)."""
    C = n_classes + 1
    # img is CHW (PyTorch convention): grid_size = ceil(H * sf), ceil(W * sf)
    H = int(math.ceil(img.shape[1] * scale_factor))
    W = int(math.ceil(img.shape[2] * scale_factor))
    N = int(boxes.shape[0])

    # Lane packing: when W divides 128, fold k = 128 // W image rows into each
    # 128-lane row -> lane-dense HBM writes with no width padding.
    if W < _LANES and _LANES % W == 0:
        k = _LANES // W
        Wk = _LANES
    else:
        k = 1
        Wk = ((W + _LANES - 1) // _LANES) * _LANES
    Hg = -(-H // k)                                  # packed group rows

    # Generation-aware tile sizing: budget outputs (double-buffered) + loop
    # temporaries against VMEM; only force a >=2-tile split when 2 TCs exist.
    phys_vmem, two_tc = _tpu_caps()
    per_row = (3 * 2 * C * Wk + 24 * Wk) * 4         # bytes per packed group row
    budget = min(int(phys_vmem * 0.6), 96 * 1024 * 1024)
    max_rows = max(1, budget // per_row)

    if Hg <= max_rows and not (two_tc and Hg >= 2 * _SUBLANES):
        tG, Hgp, n_tiles = Hg, Hg, 1                 # single full-extent block
    else:
        Hg8 = -(-Hg // _SUBLANES) * _SUBLANES
        tG = min(Hg8, max(_SUBLANES, (max_rows // _SUBLANES) * _SUBLANES))
        if two_tc and Hg8 >= 2 * _SUBLANES:
            half = -(-(Hg8 // 2) // _SUBLANES) * _SUBLANES
            tG = min(tG, max(_SUBLANES, half))
        n_tiles = -(-Hg8 // tG)
        Hgp = n_tiles * tG
    vmem_limit = int(min(phys_vmem,
                         max(32 * 1024 * 1024, per_row * tG + (2 << 20))))

    # Per-box scalars (plain JAX glue) handed to the kernel through SMEM.
    sf = jnp.float32(scale_factor)
    x0s = jnp.floor(boxes[:, 0] * sf).astype(jnp.int32)
    y0s = jnp.floor(boxes[:, 1] * sf).astype(jnp.int32)
    x1s = jnp.floor(boxes[:, 2] * sf).astype(jnp.int32)
    y1s = jnp.floor(boxes[:, 3] * sf).astype(jnp.int32)
    cx = jnp.clip((x0s + x1s) // 2, 0, W - 1)
    cy = jnp.clip((y0s + y1s) // 2, 0, H - 1)
    cid = jnp.clip(labels.astype(jnp.int32) + 1, 1, max(C - 1, 1))   # OOB-safe channel
    md = jnp.sqrt(((x1s - x0s).astype(jnp.float32) / 2.0) ** 2
                  + ((y1s - y0s).astype(jnp.float32) / 2.0) ** 2)
    md = jnp.where(md == 0.0, 1.0, md)
    inv_md = (1.0 / md).astype(jnp.float32)
    gc = cy // k                                     # packed group row of the centroid
    lc = (cy % k) * W + cx                           # packed lane of the centroid

    bi = jnp.stack([x0s, y0s, x1s, y1s, cx, cy, cid, gc, lc],
                   axis=1).reshape(-1).astype(jnp.int32)             # (N*9,)
    bf = jnp.stack([inv_md, cx.astype(jnp.float32), cy.astype(jnp.float32)],
                   axis=1).reshape(-1).astype(jnp.float32)           # (N*3,)

    # Constant lane -> (x, row-offset) maps: no vector int div/mod in-kernel.
    l = np.arange(Wk, dtype=np.int32)
    lane_x = jnp.asarray((l % W).reshape(1, Wk))
    lane_dy = jnp.asarray((l // W).reshape(1, Wk))

    kernel = functools.partial(_to_grid_kernel, n_boxes=N, k=k,
                               unroll=min(max(N, 1), 8))
    out_block = pl.BlockSpec((C, tG, Wk), lambda t: (0, t, 0))
    seg, dist, val = pl.pallas_call(
        kernel,
        out_shape=(
            jax.ShapeDtypeStruct((C, Hgp, Wk), jnp.float32),
            jax.ShapeDtypeStruct((C, Hgp, Wk), jnp.float32),
            jax.ShapeDtypeStruct((C, Hgp, Wk), jnp.float32),
        ),
        grid=(n_tiles,),
        in_specs=[
            pl.BlockSpec(memory_space=pltpu.MemorySpace.SMEM),
            pl.BlockSpec(memory_space=pltpu.MemorySpace.SMEM),
            pl.BlockSpec((1, Wk), lambda t: (0, 0)),
            pl.BlockSpec((1, Wk), lambda t: (0, 0)),
        ],
        out_specs=(out_block, out_block, out_block),
        compiler_params=pltpu.CompilerParams(
            dimension_semantics=("parallel",),
            vmem_limit_bytes=vmem_limit,
        ),
    )(bi, bf, lane_x, lane_dy)

    # Unpack the lane packing / padding.
    def unpack(a):
        if k > 1:
            a = a.reshape(C, Hgp, k, W).reshape(C, Hgp * k, W)
        return a[:, :H, :W]

    seg, dist, val = unpack(seg), unpack(dist), unpack(val)

    labels_new = {
        "train_segmentation_grid": seg,
        "train_distance_penalty_grid": dist,
        "val_segmentation_grid": val,
        "original_annotations": {"boxes": boxes, "labels": labels},
    }
    return img, labels_new


# ----------------------------- numpy reference ------------------------------
def _ref_forward(img_shape, boxes, labels, n_classes, scale_factor):
    C = n_classes + 1
    H = int(math.ceil(img_shape[1] * scale_factor))
    W = int(math.ceil(img_shape[2] * scale_factor))
    seg = np.zeros((C, H, W)); seg[0] = 1
    val = np.zeros((C, H, W)); val[0] = 1
    dist = np.zeros((C, H, W))
    xc, yc = np.meshgrid(np.arange(W), np.arange(H))
    for bbox, label in zip(boxes, labels):
        x0, y0, x1, y1 = bbox
        x0s = int(np.floor(x0 * scale_factor)); y0s = int(np.floor(y0 * scale_factor))
        x1s = int(np.floor(x1 * scale_factor)); y1s = int(np.floor(y1 * scale_factor))
        cx = min(max(0, int(np.floor((x0s + x1s) / 2))), W - 1)
        cy = min(max(0, int(np.floor((y0s + y1s) / 2))), H - 1)
        cid = int(label) + 1
        # center-point seg grid
        seg[0, cy, cx] = 0; seg[cid, cy, cx] = 1
        # val seg grid
        val[0, y0s:y1s, x0s:x1s] = 0; val[cid, y0s:y1s, x0s:x1s] = 1
        # distance penalty grid
        md = np.sqrt(((x1s - x0s) / 2) ** 2 + ((y1s - y0s) / 2) ** 2)
        if md == 0:
            md = 1
        d = np.sqrt((xc - cx) ** 2 + (yc - cy) ** 2)
        pw = np.clip(d / md, 0, 1)
        pw[cy, cx] = 1
        mask = np.zeros((H, W)); mask[y0s:y1s, x0s:x1s] = 1
        dist[cid] = np.maximum(dist[cid], pw * mask)
        dist[0] = np.maximum(dist[0], pw * mask)
    dist[dist == 0] = 1
    return seg, dist, val


if __name__ == "__main__":
    n_classes = 3
    scale_factor = 0.5
    n_boxes = 5

    key = jax.random.PRNGKey(0)
    k_img, k_xy, k_wh, k_lbl = jax.random.split(key, 4)
    img = jax.random.normal(k_img, (3, 32, 32), dtype=jnp.float32)     # CHW
    xy0 = jax.random.uniform(k_xy, (n_boxes, 2), minval=0.0, maxval=20.0)
    wh = jax.random.uniform(k_wh, (n_boxes, 2), minval=4.0, maxval=11.0)
    xy1 = jnp.minimum(xy0 + wh, 31.0)
    boxes = jnp.concatenate([xy0, xy1], axis=1).astype(jnp.float32)    # (N, 4) x0 y0 x1 y1
    labels = jax.random.randint(k_lbl, (n_boxes,), 0, n_classes).astype(jnp.int32)

    out_img, out_labels = to_grid_forward(
        img, boxes, labels, n_classes=n_classes, scale_factor=scale_factor)
    jax.block_until_ready(out_labels["train_segmentation_grid"])
    jax.block_until_ready(out_labels["train_distance_penalty_grid"])
    jax.block_until_ready(out_labels["val_segmentation_grid"])

    # correctness vs plain-numpy port of the PyTorch module
    seg_ref, dist_ref, val_ref = _ref_forward(
        img.shape, np.asarray(boxes), np.asarray(labels), n_classes, scale_factor)
    np.testing.assert_allclose(
        np.asarray(out_labels["train_segmentation_grid"]), seg_ref, atol=1e-5)
    np.testing.assert_allclose(
        np.asarray(out_labels["train_distance_penalty_grid"]), dist_ref, atol=1e-5)
    np.testing.assert_allclose(
        np.asarray(out_labels["val_segmentation_grid"]), val_ref, atol=1e-5)
    np.testing.assert_allclose(np.asarray(out_img), np.asarray(img))

    print("KERNEL_OK")
</pallas_src>

<mosaic_0001>
module attributes {stable_mosaic.version = 11 : i64} {
  func.func @_to_grid_kernel(%arg0: i32, %arg1: memref<45xi32, #tpu.memory_space<smem>>, %arg2: memref<15xf32, #tpu.memory_space<smem>>, %arg3: memref<1x128xi32, #tpu.memory_space<vmem>>, %arg4: memref<1x128xi32, #tpu.memory_space<vmem>>, %arg5: memref<4x2x128xf32, #tpu.memory_space<vmem>>, %arg6: memref<4x2x128xf32, #tpu.memory_space<vmem>>, %arg7: memref<4x2x128xf32, #tpu.memory_space<vmem>>) attributes {dimension_semantics = [#tpu.dimension_semantics<parallel>], iteration_bounds = array<i64: 1>, scalar_prefetch = 0 : i64, scratch_operands = 0 : i64, tpu.core_type = #tpu.core_type<tc>, window_params = [{transform_indices = @transform_0, window_bounds = array<i64: 45>}, {transform_indices = @transform_1, window_bounds = array<i64: 15>}, {pipeline_mode = #tpu.pipeline_mode<synchronous>, transform_indices = @transform_2, window_bounds = array<i64: 1, 128>}, {pipeline_mode = #tpu.pipeline_mode<synchronous>, transform_indices = @transform_3, window_bounds = array<i64: 1, 128>}, {transform_indices = @transform_4, window_bounds = array<i64: 4, 2, 128>}, {transform_indices = @transform_5, window_bounds = array<i64: 4, 2, 128>}, {transform_indices = @transform_6, window_bounds = array<i64: 4, 2, 128>}]} {
    %c2_i32 = arith.constant 2 : i32
    %0 = arith.muli %arg0, %c2_i32 : i32
    %c8_i32 = arith.constant 8 : i32
    %1 = arith.muli %0, %c8_i32 : i32
    %c2_i32_0 = arith.constant 2 : i32
    %2 = arith.addi %0, %c2_i32_0 : i32
    %c8_i32_1 = arith.constant 8 : i32
    %3 = arith.muli %2, %c8_i32_1 : i32
    %4 = tpu.iota {dimensions = array<i32: 0>} : vector<2x128xi32>
    %c0 = arith.constant 0 : index
    %c0_2 = arith.constant 0 : index
    %5 = vector.load %arg3[%c0, %c0_2] : memref<1x128xi32, #tpu.memory_space<vmem>>, vector<1x128xi32>
    %6 = vector.shape_cast %5 : vector<1x128xi32> to vector<1x128xi32>
    %7 = vector.broadcast %6 : vector<1x128xi32> to vector<2x128xi32>
    %8 = vector.broadcast %0 : i32 to vector<2x128xi32>
    %9 = arith.addi %8, %4 : vector<2x128xi32>
    %c8_i32_3 = arith.constant 8 : i32
    %10 = vector.broadcast %c8_i32_3 : i32 to vector<2x128xi32>
    %11 = arith.muli %9, %10 : vector<2x128xi32>
    %c0_4 = arith.constant 0 : index
    %c0_5 = arith.constant 0 : index
    %12 = vector.load %arg4[%c0_4, %c0_5] : memref<1x128xi32, #tpu.memory_space<vmem>>, vector<1x128xi32>
    %13 = vector.shape_cast %12 : vector<1x128xi32> to vector<1x128xi32>
    %14 = vector.broadcast %13 : vector<1x128xi32> to vector<2x128xi32>
    %15 = arith.addi %11, %14 : vector<2x128xi32>
    %16 = arith.sitofp %7 : vector<2x128xi32> to vector<2x128xf32>
    %17 = arith.sitofp %15 : vector<2x128xi32> to vector<2x128xf32>
    %18 = tpu.iota {dimensions = array<i32: 1>} : vector<1x128xi32>
    %cst = arith.constant 1.000000e+00 : f32
    %19 = vector.broadcast %cst : f32 to vector<2x128xf32>
    %c0_6 = arith.constant 0 : index
    %c0_7 = arith.constant 0 : index
    %c0_8 = arith.constant 0 : index
    %20 = vector.load %arg5[%c0_6, %c0_7, %c0_8] : memref<4x2x128xf32, #tpu.memory_space<vmem>>, vector<1x2x128xf32>
    %21 = vector.shape_cast %20 : vector<1x2x128xf32> to vector<2x128xf32>
    %22 = vector.shape_cast %19 : vector<2x128xf32> to vector<1x2x128xf32>
    tpu.vector_store %arg5[%c0_6, %c0_7, %c0_8], %22 {strides = array<i32>} : memref<4x2x128xf32, #tpu.memory_space<vmem>>, vector<1x2x128xf32>,
    %cst_9 = arith.constant 0.000000e+00 : f32
    %23 = vector.broadcast %cst_9 : f32 to vector<3x2x128xf32>
    %c1 = arith.constant 1 : index
    %c0_10 = arith.constant 0 : index
    %c0_11 = arith.constant 0 : index
    %24 = vector.load %arg5[%c1, %c0_10, %c0_11] : memref<4x2x128xf32, #tpu.memory_space<vmem>>, vector<3x2x128xf32>
    tpu.vector_store %arg5[%c1, %c0_10, %c0_11], %23 {strides = array<i32>} : memref<4x2x128xf32, #tpu.memory_space<vmem>>, vector<3x2x128xf32>,
    %c1_12 = arith.constant 1 : index
    %c0_13 = arith.constant 0 : index
    %c0_14 = arith.constant 0 : index
    %25 = vector.load %arg7[%c1_12, %c0_13, %c0_14] : memref<4x2x128xf32, #tpu.memory_space<vmem>>, vector<3x2x128xf32>
    tpu.vector_store %arg7[%c1_12, %c0_13, %c0_14], %23 {strides = array<i32>} : memref<4x2x128xf32, #tpu.memory_space<vmem>>, vector<3x2x128xf32>,
    %c1_15 = arith.constant 1 : index
    %c0_16 = arith.constant 0 : index
    %c0_17 = arith.constant 0 : index
    %26 = vector.load %arg6[%c1_15, %c0_16, %c0_17] : memref<4x2x128xf32, #tpu.memory_space<vmem>>, vector<3x2x128xf32>
    tpu.vector_store %arg6[%c1_15, %c0_16, %c0_17], %23 {strides = array<i32>} : memref<4x2x128xf32, #tpu.memory_space<vmem>>, vector<3x2x128xf32>,
    %cst_18 = arith.constant 0.000000e+00 : f32
    %27 = vector.broadcast %cst_18 : f32 to vector<2x128xf32>
    %c0_i32 = arith.constant 0 : i32
    %c9_i32 = arith.constant 9 : i32
    %28 = arith.muli %c0_i32, %c9_i32 : i32
    %c0_i32_19 = arith.constant 0 : i32
    %29 = arith.addi %28, %c0_i32_19 : i32
    %30 = arith.index_cast %29 : i32 to index
    %31 = memref.load %arg1[%30] : memref<45xi32, #tpu.memory_space<smem>>
    %c1_i32 = arith.constant 1 : i32
    %32 = arith.addi %28, %c1_i32 : i32
    %33 = arith.index_cast %32 : i32 to index
    %34 = memref.load %arg1[%33] : memref<45xi32, #tpu.memory_space<smem>>
    %c2_i32_20 = arith.constant 2 : i32
    %35 = arith.addi %28, %c2_i32_20 : i32
    %36 = arith.index_cast %35 : i32 to index
    %37 = memref.load %arg1[%36] : memref<45xi32, #tpu.memory_space<smem>>
    %c3_i32 = arith.constant 3 : i32
    %38 = arith.addi %28, %c3_i32 : i32
    %39 = arith.index_cast %38 : i32 to index
    %40 = memref.load %arg1[%39] : memref<45xi32, #tpu.memory_space<smem>>
    %c4_i32 = arith.constant 4 : i32
    %41 = arith.addi %28, %c4_i32 : i32
    %42 = arith.index_cast %41 : i32 to index
    %43 = memref.load %arg1[%42] : memref<45xi32, #tpu.memory_space<smem>>
    %c5_i32 = arith.constant 5 : i32
    %44 = arith.addi %28, %c5_i32 : i32
    %45 = arith.index_cast %44 : i32 to index
    %46 = memref.load %arg1[%45] : memref<45xi32, #tpu.memory_space<smem>>
    %c6_i32 = arith.constant 6 : i32
    %47 = arith.addi %28, %c6_i32 : i32
    %48 = arith.index_cast %47 : i32 to index
    %49 = memref.load %arg1[%48] : memref<45xi32, #tpu.memory_space<smem>>
    %c7_i32 = arith.constant 7 : i32
    %50 = arith.addi %28, %c7_i32 : i32
    %51 = arith.index_cast %50 : i32 to index
    %52 = memref.load %arg1[%51] : memref<45xi32, #tpu.memory_space<smem>>
    %c8_i32_21 = arith.constant 8 : i32
    %53 = arith.addi %28, %c8_i32_21 : i32
    %54 = arith.index_cast %53 : i32 to index
    %55 = memref.load %arg1[%54] : memref<45xi32, #tpu.memory_space<smem>>
    %c3_i32_22 = arith.constant 3 : i32
    %56 = arith.muli %c0_i32, %c3_i32_22 : i32
    %c0_i32_23 = arith.constant 0 : i32
    %57 = arith.addi %56, %c0_i32_23 : i32
    %58 = arith.index_cast %57 : i32 to index
    %59 = memref.load %arg2[%58] : memref<15xf32, #tpu.memory_space<smem>>
    %c3_i32_24 = arith.constant 3 : i32
    %60 = arith.muli %c0_i32, %c3_i32_24 : i32
    %c1_i32_25 = arith.constant 1 : i32
    %61 = arith.addi %60, %c1_i32_25 : i32
    %62 = arith.index_cast %61 : i32 to index
    %63 = memref.load %arg2[%62] : memref<15xf32, #tpu.memory_space<smem>>
    %c3_i32_26 = arith.constant 3 : i32
    %64 = arith.muli %c0_i32, %c3_i32_26 : i32
    %c2_i32_27 = arith.constant 2 : i32
    %65 = arith.addi %64, %c2_i32_27 : i32
    %66 = arith.index_cast %65 : i32 to index
    %67 = memref.load %arg2[%66] : memref<15xf32, #tpu.memory_space<smem>>
    %68 = vector.broadcast %31 : i32 to vector<2x128xi32>
    %69 = arith.cmpi sge, %7, %68 : vector<2x128xi32>
    %70 = vector.broadcast %37 : i32 to vector<2x128xi32>
    %71 = arith.cmpi slt, %7, %70 : vector<2x128xi32>
    %72 = arith.andi %69, %71 : vector<2x128xi1>
    %73 = vector.broadcast %34 : i32 to vector<2x128xi32>
    %74 = arith.cmpi sge, %15, %73 : vector<2x128xi32>
    %75 = arith.andi %72, %74 : vector<2x128xi1>
    %76 = vector.broadcast %40 : i32 to vector<2x128xi32>
    %77 = arith.cmpi slt, %15, %76 : vector<2x128xi32>
    %78 = arith.andi %75, %77 : vector<2x128xi1>
    %79 = vector.broadcast %43 : i32 to vector<2x128xi32>
    %80 = arith.cmpi eq, %7, %79 : vector<2x128xi32>
    %81 = vector.broadcast %46 : i32 to vector<2x128xi32>
    %82 = arith.cmpi eq, %15, %81 : vector<2x128xi32>
    %83 = arith.andi %80, %82 : vector<2x128xi1>
    %84 = vector.broadcast %63 : f32 to vector<2x128xf32>
    %85 = arith.subf %16, %84 : vector<2x128xf32>
    %86 = vector.broadcast %67 : f32 to vector<2x128xf32>
    %87 = arith.subf %17, %86 : vector<2x128xf32>
    %88 = arith.mulf %85, %85 : vector<2x128xf32>
    %89 = arith.mulf %87, %87 : vector<2x128xf32>
    %90 = arith.addf %88, %89 : vector<2x128xf32>
    %91 = math.sqrt %90 : vector<2x128xf32>
    %92 = vector.broadcast %59 : f32 to vector<2x128xf32>
    %93 = arith.mulf %91, %92 : vector<2x128xf32>
    %cst_28 = arith.constant 1.000000e+00 : f32
    %94 = vector.broadcast %cst_28 : f32 to vector<2x128xf32>
    %95 = arith.minimumf %93, %94 : vector<2x128xf32>
    %cst_29 = arith.constant 1.000000e+00 : f32
    %96 = vector.broadcast %cst_29 : f32 to vector<2x128xf32>
    %97 = arith.select %83, %96, %95 : vector<2x128xi1>, vector<2x128xf32>
    %cst_30 = arith.constant 0.000000e+00 : f32
    %98 = vector.broadcast %cst_30 : f32 to vector<2x128xf32>
    %99 = arith.select %78, %97, %98 : vector<2x128xi1>, vector<2x128xf32>
    %100 = arith.maximumf %27, %99 : vector<2x128xf32>
    %101 = arith.cmpi sgt, %40, %1 : i32
    %102 = arith.cmpi slt, %34, %3 : i32
    %103 = arith.andi %101, %102 : i1
    %104 = arith.extui %103 : i1 to i32
    %c0_i32_31 = arith.constant 0 : i32
    %105 = arith.cmpi ne, %104, %c0_i32_31 : i32
    scf.if %105 {
      %469 = arith.index_cast %49 : i32 to index
      %c0_146 = arith.constant 0 : index
      %c0_147 = arith.constant 0 : index
      %470 = vector.load %arg6[%469, %c0_146, %c0_147] : memref<4x2x128xf32, #tpu.memory_space<vmem>>, vector<1x2x128xf32>
      %471 = vector.shape_cast %470 : vector<1x2x128xf32> to vector<2x128xf32>
      %472 = arith.maximumf %471, %99 : vector<2x128xf32>
      %473 = arith.index_cast %49 : i32 to index
      %c0_148 = arith.constant 0 : index
      %c0_149 = arith.constant 0 : index
      %474 = vector.load %arg6[%473, %c0_148, %c0_149] : memref<4x2x128xf32, #tpu.memory_space<vmem>>, vector<1x2x128xf32>
      %475 = vector.shape_cast %474 : vector<1x2x128xf32> to vector<2x128xf32>
      %476 = vector.shape_cast %472 : vector<2x128xf32> to vector<1x2x128xf32>
      tpu.vector_store %arg6[%473, %c0_148, %c0_149], %476 {strides = array<i32>} : memref<4x2x128xf32, #tpu.memory_space<vmem>>, vector<1x2x128xf32>,
      %477 = arith.index_cast %49 : i32 to index
      %c0_150 = arith.constant 0 : index
      %c0_151 = arith.constant 0 : index
      %478 = vector.load %arg7[%477, %c0_150, %c0_151] : memref<4x2x128xf32, #tpu.memory_space<vmem>>, vector<1x2x128xf32>
      %479 = vector.shape_cast %478 : vector<1x2x128xf32> to vector<2x128xf32>
      %cst_152 = arith.constant 1.000000e+00 : f32
      %480 = vector.broadcast %cst_152 : f32 to vector<2x128xf32>
      %481 = arith.select %78, %480, %479 : vector<2x128xi1>, vector<2x128xf32>
      %482 = arith.index_cast %49 : i32 to index
      %c0_153 = arith.constant 0 : index
      %c0_154 = arith.constant 0 : index
      %483 = vector.load %arg7[%482, %c0_153, %c0_154] : memref<4x2x128xf32, #tpu.memory_space<vmem>>, vector<1x2x128xf32>
      %484 = vector.shape_cast %483 : vector<1x2x128xf32> to vector<2x128xf32>
      %485 = vector.shape_cast %481 : vector<2x128xf32> to vector<1x2x128xf32>
      tpu.vector_store %arg7[%482, %c0_153, %c0_154], %485 {strides = array<i32>} : memref<4x2x128xf32, #tpu.memory_space<vmem>>, vector<1x2x128xf32>,
    } else {
    }
    %106 = arith.cmpi sge, %52, %0 : i32
    %c2_i32_32 = arith.constant 2 : i32
    %107 = arith.addi %0, %c2_i32_32 : i32
    %108 = arith.cmpi slt, %52, %107 : i32
    %109 = arith.andi %106, %108 : i1
    %110 = arith.extui %109 : i1 to i32
    %c0_i32_33 = arith.constant 0 : i32
    %111 = arith.cmpi ne, %110, %c0_i32_33 : i32
    scf.if %111 {
      %469 = arith.subi %52, %0 : i32
      %470 = vector.broadcast %55 : i32 to vector<1x128xi32>
      %471 = arith.cmpi eq, %18, %470 : vector<1x128xi32>
      %c0_146 = arith.constant 0 : index
      %472 = arith.index_cast %469 : i32 to index
      %c0_147 = arith.constant 0 : index
      %473 = vector.load %arg5[%c0_146, %472, %c0_147] : memref<4x2x128xf32, #tpu.memory_space<vmem>>, vector<1x1x128xf32>
      %474 = vector.shape_cast %473 : vector<1x1x128xf32> to vector<1x128xf32>
      %cst_148 = arith.constant 0.000000e+00 : f32
      %475 = vector.broadcast %cst_148 : f32 to vector<1x128xf32>
      %476 = arith.select %471, %475, %474 : vector<1x128xi1>, vector<1x128xf32>
      %c0_149 = arith.constant 0 : index
      %477 = arith.index_cast %469 : i32 to index
      %c0_150 = arith.constant 0 : index
      %478 = vector.load %arg5[%c0_149, %477, %c0_150] : memref<4x2x128xf32, #tpu.memory_space<vmem>>, vector<1x1x128xf32>
      %479 = vector.shape_cast %478 : vector<1x1x128xf32> to vector<1x128xf32>
      %480 = vector.shape_cast %476 : vector<1x128xf32> to vector<1x1x128xf32>
      tpu.vector_store %arg5[%c0_149, %477, %c0_150], %480 {strides = array<i32>} : memref<4x2x128xf32, #tpu.memory_space<vmem>>, vector<1x1x128xf32>,
      %481 = arith.index_cast %49 : i32 to index
      %482 = arith.index_cast %469 : i32 to index
      %c0_151 = arith.constant 0 : index
      %483 = vector.load %arg5[%481, %482, %c0_151] : memref<4x2x128xf32, #tpu.memory_space<vmem>>, vector<1x1x128xf32>
      %484 = vector.shape_cast %483 : vector<1x1x128xf32> to vector<1x128xf32>
      %cst_152 = arith.constant 1.000000e+00 : f32
      %485 = vector.broadcast %cst_152 : f32 to vector<1x128xf32>
      %486 = arith.select %471, %485, %484 : vector<1x128xi1>, vector<1x128xf32>
      %487 = arith.index_cast %49 : i32 to index
      %488 = arith.index_cast %469 : i32 to index
      %c0_153 = arith.constant 0 : index
      %489 = vector.load %arg5[%487, %488, %c0_153] : memref<4x2x128xf32, #tpu.memory_space<vmem>>, vector<1x1x128xf32>
      %490 = vector.shape_cast %489 : vector<1x1x128xf32> to vector<1x128xf32>
      %491 = vector.shape_cast %486 : vector<1x128xf32> to vector<1x1x128xf32>
      tpu.vector_store %arg5[%487, %488, %c0_153], %491 {strides = array<i32>} : memref<4x2x128xf32, #tpu.memory_space<vmem>>, vector<1x1x128xf32>,
    } else {
    }
    %c1_i32_34 = arith.constant 1 : i32
    %c9_i32_35 = arith.constant 9 : i32
    %112 = arith.muli %c1_i32_34, %c9_i32_35 : i32
    %c0_i32_36 = arith.constant 0 : i32
    %113 = arith.addi %112, %c0_i32_36 : i32
    %114 = arith.index_cast %113 : i32 to index
    %115 = memref.load %arg1[%114] : memref<45xi32, #tpu.memory_space<smem>>
    %c1_i32_37 = arith.constant 1 : i32
    %116 = arith.addi %112, %c1_i32_37 : i32
    %117 = arith.index_cast %116 : i32 to index
    %118 = memref.load %arg1[%117] : memref<45xi32, #tpu.memory_space<smem>>
    %c2_i32_38 = arith.constant 2 : i32
    %119 = arith.addi %112, %c2_i32_38 : i32
    %120 = arith.index_cast %119 : i32 to index
    %121 = memref.load %arg1[%120] : memref<45xi32, #tpu.memory_space<smem>>
    %c3_i32_39 = arith.constant 3 : i32
    %122 = arith.addi %112, %c3_i32_39 : i32
    %123 = arith.index_cast %122 : i32 to index
    %124 = memref.load %arg1[%123] : memref<45xi32, #tpu.memory_space<smem>>
    %c4_i32_40 = arith.constant 4 : i32
    %125 = arith.addi %112, %c4_i32_40 : i32
    %126 = arith.index_cast %125 : i32 to index
    %127 = memref.load %arg1[%126] : memref<45xi32, #tpu.memory_space<smem>>
    %c5_i32_41 = arith.constant 5 : i32
    %128 = arith.addi %112, %c5_i32_41 : i32
    %129 = arith.index_cast %128 : i32 to index
    %130 = memref.load %arg1[%129] : memref<45xi32, #tpu.memory_space<smem>>
    %c6_i32_42 = arith.constant 6 : i32
    %131 = arith.addi %112, %c6_i32_42 : i32
    %132 = arith.index_cast %131 : i32 to index
    %133 = memref.load %arg1[%132] : memref<45xi32, #tpu.memory_space<smem>>
    %c7_i32_43 = arith.constant 7 : i32
    %134 = arith.addi %112, %c7_i32_43 : i32
    %135 = arith.index_cast %134 : i32 to index
    %136 = memref.load %arg1[%135] : memref<45xi32, #tpu.memory_space<smem>>
    %c8_i32_44 = arith.constant 8 : i32
    %137 = arith.addi %112, %c8_i32_44 : i32
    %138 = arith.index_cast %137 : i32 to index
    %139 = memref.load %arg1[%138] : memref<45xi32, #tpu.memory_space<smem>>
    %c3_i32_45 = arith.constant 3 : i32
    %140 = arith.muli %c1_i32_34, %c3_i32_45 : i32
    %c0_i32_46 = arith.constant 0 : i32
    %141 = arith.addi %140, %c0_i32_46 : i32
    %142 = arith.index_cast %141 : i32 to index
    %143 = memref.load %arg2[%142] : memref<15xf32, #tpu.memory_space<smem>>
    %c3_i32_47 = arith.constant 3 : i32
    %144 = arith.muli %c1_i32_34, %c3_i32_47 : i32
    %c1_i32_48 = arith.constant 1 : i32
    %145 = arith.addi %144, %c1_i32_48 : i32
    %146 = arith.index_cast %145 : i32 to index
    %147 = memref.load %arg2[%146] : memref<15xf32, #tpu.memory_space<smem>>
    %c3_i32_49 = arith.constant 3 : i32
    %148 = arith.muli %c1_i32_34, %c3_i32_49 : i32
    %c2_i32_50 = arith.constant 2 : i32
    %149 = arith.addi %148, %c2_i32_50 : i32
    %150 = arith.index_cast %149 : i32 to index
    %151 = memref.load %arg2[%150] : memref<15xf32, #tpu.memory_space<smem>>
    %152 = vector.broadcast %115 : i32 to vector<2x128xi32>
    %153 = arith.cmpi sge, %7, %152 : vector<2x128xi32>
    %154 = vector.broadcast %121 : i32 to vector<2x128xi32>
    %155 = arith.cmpi slt, %7, %154 : vector<2x128xi32>
    %156 = arith.andi %153, %155 : vector<2x128xi1>
    %157 = vector.broadcast %118 : i32 to vector<2x128xi32>
    %158 = arith.cmpi sge, %15, %157 : vector<2x128xi32>
    %159 = arith.andi %156, %158 : vector<2x128xi1>
    %160 = vector.broadcast %124 : i32 to vector<2x128xi32>
    %161 = arith.cmpi slt, %15, %160 : vector<2x128xi32>
    %162 = arith.andi %159, %161 : vector<2x128xi1>
    %163 = vector.broadcast %127 : i32 to vector<2x128xi32>
    %164 = arith.cmpi eq, %7, %163 : vector<2x128xi32>
    %165 = vector.broadcast %130 : i32 to vector<2x128xi32>
    %166 = arith.cmpi eq, %15, %165 : vector<2x128xi32>
    %167 = arith.andi %164, %166 : vector<2x128xi1>
    %168 = vector.broadcast %147 : f32 to vector<2x128xf32>
    %169 = arith.subf %16, %168 : vector<2x128xf32>
    %170 = vector.broadcast %151 : f32 to vector<2x128xf32>
    %171 = arith.subf %17, %170 : vector<2x128xf32>
    %172 = arith.mulf %169, %169 : vector<2x128xf32>
    %173 = arith.mulf %171, %171 : vector<2x128xf32>
    %174 = arith.addf %172, %173 : vector<2x128xf32>
    %175 = math.sqrt %174 : vector<2x128xf32>
    %176 = vector.broadcast %143 : f32 to vector<2x128xf32>
    %177 = arith.mulf %175, %176 : vector<2x128xf32>
    %cst_51 = arith.constant 1.000000e+00 : f32
    %178 = vector.broadcast %cst_51 : f32 to vector<2x128xf32>
    %179 = arith.minimumf %177, %178 : vector<2x128xf32>
    %cst_52 = arith.constant 1.000000e+00 : f32
    %180 = vector.broadcast %cst_52 : f32 to vector<2x128xf32>
    %181 = arith.select %167, %180, %179 : vector<2x128xi1>, vector<2x128xf32>
    %cst_53 = arith.constant 0.000000e+00 : f32
    %182 = vector.broadcast %cst_53 : f32 to vector<2x128xf32>
    %183 = arith.select %162, %181, %182 : vector<2x128xi1>, vector<2x128xf32>
    %184 = arith.maximumf %100, %183 : vector<2x128xf32>
    %185 = arith.cmpi sgt, %124, %1 : i32
    %186 = arith.cmpi slt, %118, %3 : i32
    %187 = arith.andi %185, %186 : i1
    %188 = arith.extui %187 : i1 to i32
    %c0_i32_54 = arith.constant 0 : i32
    %189 = arith.cmpi ne, %188, %c0_i32_54 : i32
    scf.if %189 {
      %469 = arith.index_cast %133 : i32 to index
      %c0_146 = arith.constant 0 : index
      %c0_147 = arith.constant 0 : index
      %470 = vector.load %arg6[%469, %c0_146, %c0_147] : memref<4x2x128xf32, #tpu.memory_space<vmem>>, vector<1x2x128xf32>
      %471 = vector.shape_cast %470 : vector<1x2x128xf32> to vector<2x128xf32>
      %472 = arith.maximumf %471, %183 : vector<2x128xf32>
      %473 = arith.index_cast %133 : i32 to index
      %c0_148 = arith.constant 0 : index
      %c0_149 = arith.constant 0 : index
      %474 = vector.load %arg6[%473, %c0_148, %c0_149] : memref<4x2x128xf32, #tpu.memory_space<vmem>>, vector<1x2x128xf32>
      %475 = vector.shape_cast %474 : vector<1x2x128xf32> to vector<2x128xf32>
      %476 = vector.shape_cast %472 : vector<2x128xf32> to vector<1x2x128xf32>
      tpu.vector_store %arg6[%473, %c0_148, %c0_149], %476 {strides = array<i32>} : memref<4x2x128xf32, #tpu.memory_space<vmem>>, vector<1x2x128xf32>,
      %477 = arith.index_cast %133 : i32 to index
      %c0_150 = arith.constant 0 : index
      %c0_151 = arith.constant 0 : index
      %478 = vector.load %arg7[%477, %c0_150, %c0_151] : memref<4x2x128xf32, #tpu.memory_space<vmem>>, vector<1x2x128xf32>
      %479 = vector.shape_cast %478 : vector<1x2x128xf32> to vector<2x128xf32>
      %cst_152 = arith.constant 1.000000e+00 : f32
      %480 = vector.broadcast %cst_152 : f32 to vector<2x128xf32>
      %481 = arith.select %162, %480, %479 : vector<2x128xi1>, vector<2x128xf32>
      %482 = arith.index_cast %133 : i32 to index
      %c0_153 = arith.constant 0 : index
      %c0_154 = arith.constant 0 : index
      %483 = vector.load %arg7[%482, %c0_153, %c0_154] : memref<4x2x128xf32, #tpu.memory_space<vmem>>, vector<1x2x128xf32>
      %484 = vector.shape_cast %483 : vector<1x2x128xf32> to vector<2x128xf32>
      %485 = vector.shape_cast %481 : vector<2x128xf32> to vector<1x2x128xf32>
      tpu.vector_store %arg7[%482, %c0_153, %c0_154], %485 {strides = array<i32>} : memref<4x2x128xf32, #tpu.memory_space<vmem>>, vector<1x2x128xf32>,
    } else {
    }
    %190 = arith.cmpi sge, %136, %0 : i32
    %c2_i32_55 = arith.constant 2 : i32
    %191 = arith.addi %0, %c2_i32_55 : i32
    %192 = arith.cmpi slt, %136, %191 : i32
    %193 = arith.andi %190, %192 : i1
    %194 = arith.extui %193 : i1 to i32
    %c0_i32_56 = arith.constant 0 : i32
    %195 = arith.cmpi ne, %194, %c0_i32_56 : i32
    scf.if %195 {
      %469 = arith.subi %136, %0 : i32
      %470 = vector.broadcast %139 : i32 to vector<1x128xi32>
      %471 = arith.cmpi eq, %18, %470 : vector<1x128xi32>
      %c0_146 = arith.constant 0 : index
      %472 = arith.index_cast %469 : i32 to index
      %c0_147 = arith.constant 0 : index
      %473 = vector.load %arg5[%c0_146, %472, %c0_147] : memref<4x2x128xf32, #tpu.memory_space<vmem>>, vector<1x1x128xf32>
      %474 = vector.shape_cast %473 : vector<1x1x128xf32> to vector<1x128xf32>
      %cst_148 = arith.constant 0.000000e+00 : f32
      %475 = vector.broadcast %cst_148 : f32 to vector<1x128xf32>
      %476 = arith.select %471, %475, %474 : vector<1x128xi1>, vector<1x128xf32>
      %c0_149 = arith.constant 0 : index
      %477 = arith.index_cast %469 : i32 to index
      %c0_150 = arith.constant 0 : index
      %478 = vector.load %arg5[%c0_149, %477, %c0_150] : memref<4x2x128xf32, #tpu.memory_space<vmem>>, vector<1x1x128xf32>
      %479 = vector.shape_cast %478 : vector<1x1x128xf32> to vector<1x128xf32>
      %480 = vector.shape_cast %476 : vector<1x128xf32> to vector<1x1x128xf32>
      tpu.vector_store %arg5[%c0_149, %477, %c0_150], %480 {strides = array<i32>} : memref<4x2x128xf32, #tpu.memory_space<vmem>>, vector<1x1x128xf32>,
      %481 = arith.index_cast %133 : i32 to index
      %482 = arith.index_cast %469 : i32 to index
      %c0_151 = arith.constant 0 : index
      %483 = vector.load %arg5[%481, %482, %c0_151] : memref<4x2x128xf32, #tpu.memory_space<vmem>>, vector<1x1x128xf32>
      %484 = vector.shape_cast %483 : vector<1x1x128xf32> to vector<1x128xf32>
      %cst_152 = arith.constant 1.000000e+00 : f32
      %485 = vector.broadcast %cst_152 : f32 to vector<1x128xf32>
      %486 = arith.select %471, %485, %484 : vector<1x128xi1>, vector<1x128xf32>
      %487 = arith.index_cast %133 : i32 to index
      %488 = arith.index_cast %469 : i32 to index
      %c0_153 = arith.constant 0 : index
      %489 = vector.load %arg5[%487, %488, %c0_153] : memref<4x2x128xf32, #tpu.memory_space<vmem>>, vector<1x1x128xf32>
      %490 = vector.shape_cast %489 : vector<1x1x128xf32> to vector<1x128xf32>
      %491 = vector.shape_cast %486 : vector<1x128xf32> to vector<1x1x128xf32>
      tpu.vector_store %arg5[%487, %488, %c0_153], %491 {strides = array<i32>} : memref<4x2x128xf32, #tpu.memory_space<vmem>>, vector<1x1x128xf32>,
    } else {
    }
    %c2_i32_57 = arith.constant 2 : i32
    %c9_i32_58 = arith.constant 9 : i32
    %196 = arith.muli %c2_i32_57, %c9_i32_58 : i32
    %c0_i32_59 = arith.constant 0 : i32
    %197 = arith.addi %196, %c0_i32_59 : i32
    %198 = arith.index_cast %197 : i32 to index
    %199 = memref.load %arg1[%198] : memref<45xi32, #tpu.memory_space<smem>>
    %c1_i32_60 = arith.constant 1 : i32
    %200 = arith.addi %196, %c1_i32_60 : i32
    %201 = arith.index_cast %200 : i32 to index
    %202 = memref.load %arg1[%201] : memref<45xi32, #tpu.memory_space<smem>>
    %c2_i32_61 = arith.constant 2 : i32
    %203 = arith.addi %196, %c2_i32_61 : i32
    %204 = arith.index_cast %203 : i32 to index
    %205 = memref.load %arg1[%204] : memref<45xi32, #tpu.memory_space<smem>>
    %c3_i32_62 = arith.constant 3 : i32
    %206 = arith.addi %196, %c3_i32_62 : i32
    %207 = arith.index_cast %206 : i32 to index
    %208 = memref.load %arg1[%207] : memref<45xi32, #tpu.memory_space<smem>>
    %c4_i32_63 = arith.constant 4 : i32
    %209 = arith.addi %196, %c4_i32_63 : i32
    %210 = arith.index_cast %209 : i32 to index
    %211 = memref.load %arg1[%210] : memref<45xi32, #tpu.memory_space<smem>>
    %c5_i32_64 = arith.constant 5 : i32
    %212 = arith.addi %196, %c5_i32_64 : i32
    %213 = arith.index_cast %212 : i32 to index
    %214 = memref.load %arg1[%213] : memref<45xi32, #tpu.memory_space<smem>>
    %c6_i32_65 = arith.constant 6 : i32
    %215 = arith.addi %196, %c6_i32_65 : i32
    %216 = arith.index_cast %215 : i32 to index
    %217 = memref.load %arg1[%216] : memref<45xi32, #tpu.memory_space<smem>>
    %c7_i32_66 = arith.constant 7 : i32
    %218 = arith.addi %196, %c7_i32_66 : i32
    %219 = arith.index_cast %218 : i32 to index
    %220 = memref.load %arg1[%219] : memref<45xi32, #tpu.memory_space<smem>>
    %c8_i32_67 = arith.constant 8 : i32
    %221 = arith.addi %196, %c8_i32_67 : i32
    %222 = arith.index_cast %221 : i32 to index
    %223 = memref.load %arg1[%222] : memref<45xi32, #tpu.memory_space<smem>>
    %c3_i32_68 = arith.constant 3 : i32
    %224 = arith.muli %c2_i32_57, %c3_i32_68 : i32
    %c0_i32_69 = arith.constant 0 : i32
    %225 = arith.addi %224, %c0_i32_69 : i32
    %226 = arith.index_cast %225 : i32 to index
    %227 = memref.load %arg2[%226] : memref<15xf32, #tpu.memory_space<smem>>
    %c3_i32_70 = arith.constant 3 : i32
    %228 = arith.muli %c2_i32_57, %c3_i32_70 : i32
    %c1_i32_71 = arith.constant 1 : i32
    %229 = arith.addi %228, %c1_i32_71 : i32
    %230 = arith.index_cast %229 : i32 to index
    %231 = memref.load %arg2[%230] : memref<15xf32, #tpu.memory_space<smem>>
    %c3_i32_72 = arith.constant 3 : i32
    %232 = arith.muli %c2_i32_57, %c3_i32_72 : i32
    %c2_i32_73 = arith.constant 2 : i32
    %233 = arith.addi %232, %c2_i32_73 : i32
    %234 = arith.index_cast %233 : i32 to index
    %235 = memref.load %arg2[%234] : memref<15xf32, #tpu.memory_space<smem>>
    %236 = vector.broadcast %199 : i32 to vector<2x128xi32>
    %237 = arith.cmpi sge, %7, %236 : vector<2x128xi32>
    %238 = vector.broadcast %205 : i32 to vector<2x128xi32>
    %239 = arith.cmpi slt, %7, %238 : vector<2x128xi32>
    %240 = arith.andi %237, %239 : vector<2x128xi1>
    %241 = vector.broadcast %202 : i32 to vector<2x128xi32>
    %242 = arith.cmpi sge, %15, %241 : vector<2x128xi32>
    %243 = arith.andi %240, %242 : vector<2x128xi1>
    %244 = vector.broadcast %208 : i32 to vector<2x128xi32>
    %245 = arith.cmpi slt, %15, %244 : vector<2x128xi32>
    %246 = arith.andi %243, %245 : vector<2x128xi1>
    %247 = vector.broadcast %211 : i32 to vector<2x128xi32>
    %248 = arith.cmpi eq, %7, %247 : vector<2x128xi32>
    %249 = vector.broadcast %214 : i32 to vector<2x128xi32>
    %250 = arith.cmpi eq, %15, %249 : vector<2x128xi32>
    %251 = arith.andi %248, %250 : vector<2x128xi1>
    %252 = vector.broadcast %231 : f32 to vector<2x128xf32>
    %253 = arith.subf %16, %252 : vector<2x128xf32>
    %254 = vector.broadcast %235 : f32 to vector<2x128xf32>
    %255 = arith.subf %17, %254 : vector<2x128xf32>
    %256 = arith.mulf %253, %253 : vector<2x128xf32>
    %257 = arith.mulf %255, %255 : vector<2x128xf32>
    %258 = arith.addf %256, %257 : vector<2x128xf32>
    %259 = math.sqrt %258 : vector<2x128xf32>
    %260 = vector.broadcast %227 : f32 to vector<2x128xf32>
    %261 = arith.mulf %259, %260 : vector<2x128xf32>
    %cst_74 = arith.constant 1.000000e+00 : f32
    %262 = vector.broadcast %cst_74 : f32 to vector<2x128xf32>
    %263 = arith.minimumf %261, %262 : vector<2x128xf32>
    %cst_75 = arith.constant 1.000000e+00 : f32
    %264 = vector.broadcast %cst_75 : f32 to vector<2x128xf32>
    %265 = arith.select %251, %264, %263 : vector<2x128xi1>, vector<2x128xf32>
    %cst_76 = arith.constant 0.000000e+00 : f32
    %266 = vector.broadcast %cst_76 : f32 to vector<2x128xf32>
    %267 = arith.select %246, %265, %266 : vector<2x128xi1>, vector<2x128xf32>
    %268 = arith.maximumf %184, %267 : vector<2x128xf32>
    %269 = arith.cmpi sgt, %208, %1 : i32
    %270 = arith.cmpi slt, %202, %3 : i32
    %271 = arith.andi %269, %270 : i1
    %272 = arith.extui %271 : i1 to i32
    %c0_i32_77 = arith.constant 0 : i32
    %273 = arith.cmpi ne, %272, %c0_i32_77 : i32
    scf.if %273 {
      %469 = arith.index_cast %217 : i32 to index
      %c0_146 = arith.constant 0 : index
      %c0_147 = arith.constant 0 : index
      %470 = vector.load %arg6[%469, %c0_146, %c0_147] : memref<4x2x128xf32, #tpu.memory_space<vmem>>, vector<1x2x128xf32>
      %471 = vector.shape_cast %470 : vector<1x2x128xf32> to vector<2x128xf32>
      %472 = arith.maximumf %471, %267 : vector<2x128xf32>
      %473 = arith.index_cast %217 : i32 to index
      %c0_148 = arith.constant 0 : index
      %c0_149 = arith.constant 0 : index
      %474 = vector.load %arg6[%473, %c0_148, %c0_149] : memref<4x2x128xf32, #tpu.memory_space<vmem>>, vector<1x2x128xf32>
      %475 = vector.shape_cast %474 : vector<1x2x128xf32> to vector<2x128xf32>
      %476 = vector.shape_cast %472 : vector<2x128xf32> to vector<1x2x128xf32>
      tpu.vector_store %arg6[%473, %c0_148, %c0_149], %476 {strides = array<i32>} : memref<4x2x128xf32, #tpu.memory_space<vmem>>, vector<1x2x128xf32>,
      %477 = arith.index_cast %217 : i32 to index
      %c0_150 = arith.constant 0 : index
      %c0_151 = arith.constant 0 : index
      %478 = vector.load %arg7[%477, %c0_150, %c0_151] : memref<4x2x128xf32, #tpu.memory_space<vmem>>, vector<1x2x128xf32>
      %479 = vector.shape_cast %478 : vector<1x2x128xf32> to vector<2x128xf32>
      %cst_152 = arith.constant 1.000000e+00 : f32
      %480 = vector.broadcast %cst_152 : f32 to vector<2x128xf32>
      %481 = arith.select %246, %480, %479 : vector<2x128xi1>, vector<2x128xf32>
      %482 = arith.index_cast %217 : i32 to index
      %c0_153 = arith.constant 0 : index
      %c0_154 = arith.constant 0 : index
      %483 = vector.load %arg7[%482, %c0_153, %c0_154] : memref<4x2x128xf32, #tpu.memory_space<vmem>>, vector<1x2x128xf32>
      %484 = vector.shape_cast %483 : vector<1x2x128xf32> to vector<2x128xf32>
      %485 = vector.shape_cast %481 : vector<2x128xf32> to vector<1x2x128xf32>
      tpu.vector_store %arg7[%482, %c0_153, %c0_154], %485 {strides = array<i32>} : memref<4x2x128xf32, #tpu.memory_space<vmem>>, vector<1x2x128xf32>,
    } else {
    }
    %274 = arith.cmpi sge, %220, %0 : i32
    %c2_i32_78 = arith.constant 2 : i32
    %275 = arith.addi %0, %c2_i32_78 : i32
    %276 = arith.cmpi slt, %220, %275 : i32
    %277 = arith.andi %274, %276 : i1
    %278 = arith.extui %277 : i1 to i32
    %c0_i32_79 = arith.constant 0 : i32
    %279 = arith.cmpi ne, %278, %c0_i32_79 : i32
    scf.if %279 {
      %469 = arith.subi %220, %0 : i32
      %470 = vector.broadcast %223 : i32 to vector<1x128xi32>
      %471 = arith.cmpi eq, %18, %470 : vector<1x128xi32>
      %c0_146 = arith.constant 0 : index
      %472 = arith.index_cast %469 : i32 to index
      %c0_147 = arith.constant 0 : index
      %473 = vector.load %arg5[%c0_146, %472, %c0_147] : memref<4x2x128xf32, #tpu.memory_space<vmem>>, vector<1x1x128xf32>
      %474 = vector.shape_cast %473 : vector<1x1x128xf32> to vector<1x128xf32>
      %cst_148 = arith.constant 0.000000e+00 : f32
      %475 = vector.broadcast %cst_148 : f32 to vector<1x128xf32>
      %476 = arith.select %471, %475, %474 : vector<1x128xi1>, vector<1x128xf32>
      %c0_149 = arith.constant 0 : index
      %477 = arith.index_cast %469 : i32 to index
      %c0_150 = arith.constant 0 : index
      %478 = vector.load %arg5[%c0_149, %477, %c0_150] : memref<4x2x128xf32, #tpu.memory_space<vmem>>, vector<1x1x128xf32>
      %479 = vector.shape_cast %478 : vector<1x1x128xf32> to vector<1x128xf32>
      %480 = vector.shape_cast %476 : vector<1x128xf32> to vector<1x1x128xf32>
      tpu.vector_store %arg5[%c0_149, %477, %c0_150], %480 {strides = array<i32>} : memref<4x2x128xf32, #tpu.memory_space<vmem>>, vector<1x1x128xf32>,
      %481 = arith.index_cast %217 : i32 to index
      %482 = arith.index_cast %469 : i32 to index
      %c0_151 = arith.constant 0 : index
      %483 = vector.load %arg5[%481, %482, %c0_151] : memref<4x2x128xf32, #tpu.memory_space<vmem>>, vector<1x1x128xf32>
      %484 = vector.shape_cast %483 : vector<1x1x128xf32> to vector<1x128xf32>
      %cst_152 = arith.constant 1.000000e+00 : f32
      %485 = vector.broadcast %cst_152 : f32 to vector<1x128xf32>
      %486 = arith.select %471, %485, %484 : vector<1x128xi1>, vector<1x128xf32>
      %487 = arith.index_cast %217 : i32 to index
      %488 = arith.index_cast %469 : i32 to index
      %c0_153 = arith.constant 0 : index
      %489 = vector.load %arg5[%487, %488, %c0_153] : memref<4x2x128xf32, #tpu.memory_space<vmem>>, vector<1x1x128xf32>
      %490 = vector.shape_cast %489 : vector<1x1x128xf32> to vector<1x128xf32>
      %491 = vector.shape_cast %486 : vector<1x128xf32> to vector<1x1x128xf32>
      tpu.vector_store %arg5[%487, %488, %c0_153], %491 {strides = array<i32>} : memref<4x2x128xf32, #tpu.memory_space<vmem>>, vector<1x1x128xf32>,
    } else {
    }
    %c3_i32_80 = arith.constant 3 : i32
    %c9_i32_81 = arith.constant 9 : i32
    %280 = arith.muli %c3_i32_80, %c9_i32_81 : i32
    %c0_i32_82 = arith.constant 0 : i32
    %281 = arith.addi %280, %c0_i32_82 : i32
    %282 = arith.index_cast %281 : i32 to index
    %283 = memref.load %arg1[%282] : memref<45xi32, #tpu.memory_space<smem>>
    %c1_i32_83 = arith.constant 1 : i32
    %284 = arith.addi %280, %c1_i32_83 : i32
    %285 = arith.index_cast %284 : i32 to index
    %286 = memref.load %arg1[%285] : memref<45xi32, #tpu.memory_space<smem>>
    %c2_i32_84 = arith.constant 2 : i32
    %287 = arith.addi %280, %c2_i32_84 : i32
    %288 = arith.index_cast %287 : i32 to index
    %289 = memref.load %arg1[%288] : memref<45xi32, #tpu.memory_space<smem>>
    %c3_i32_85 = arith.constant 3 : i32
    %290 = arith.addi %280, %c3_i32_85 : i32
    %291 = arith.index_cast %290 : i32 to index
    %292 = memref.load %arg1[%291] : memref<45xi32, #tpu.memory_space<smem>>
    %c4_i32_86 = arith.constant 4 : i32
    %293 = arith.addi %280, %c4_i32_86 : i32
    %294 = arith.index_cast %293 : i32 to index
    %295 = memref.load %arg1[%294] : memref<45xi32, #tpu.memory_space<smem>>
    %c5_i32_87 = arith.constant 5 : i32
    %296 = arith.addi %280, %c5_i32_87 : i32
    %297 = arith.index_cast %296 : i32 to index
    %298 = memref.load %arg1[%297] : memref<45xi32, #tpu.memory_space<smem>>
    %c6_i32_88 = arith.constant 6 : i32
    %299 = arith.addi %280, %c6_i32_88 : i32
    %300 = arith.index_cast %299 : i32 to index
    %301 = memref.load %arg1[%300] : memref<45xi32, #tpu.memory_space<smem>>
    %c7_i32_89 = arith.constant 7 : i32
    %302 = arith.addi %280, %c7_i32_89 : i32
    %303 = arith.index_cast %302 : i32 to index
    %304 = memref.load %arg1[%303] : memref<45xi32, #tpu.memory_space<smem>>
    %c8_i32_90 = arith.constant 8 : i32
    %305 = arith.addi %280, %c8_i32_90 : i32
    %306 = arith.index_cast %305 : i32 to index
    %307 = memref.load %arg1[%306] : memref<45xi32, #tpu.memory_space<smem>>
    %c3_i32_91 = arith.constant 3 : i32
    %308 = arith.muli %c3_i32_80, %c3_i32_91 : i32
    %c0_i32_92 = arith.constant 0 : i32
    %309 = arith.addi %308, %c0_i32_92 : i32
    %310 = arith.index_cast %309 : i32 to index
    %311 = memref.load %arg2[%310] : memref<15xf32, #tpu.memory_space<smem>>
    %c3_i32_93 = arith.constant 3 : i32
    %312 = arith.muli %c3_i32_80, %c3_i32_93 : i32
    %c1_i32_94 = arith.constant 1 : i32
    %313 = arith.addi %312, %c1_i32_94 : i32
    %314 = arith.index_cast %313 : i32 to index
    %315 = memref.load %arg2[%314] : memref<15xf32, #tpu.memory_space<smem>>
    %c3_i32_95 = arith.constant 3 : i32
    %316 = arith.muli %c3_i32_80, %c3_i32_95 : i32
    %c2_i32_96 = arith.constant 2 : i32
    %317 = arith.addi %316, %c2_i32_96 : i32
    %318 = arith.index_cast %317 : i32 to index
    %319 = memref.load %arg2[%318] : memref<15xf32, #tpu.memory_space<smem>>
    %320 = vector.broadcast %283 : i32 to vector<2x128xi32>
    %321 = arith.cmpi sge, %7, %320 : vector<2x128xi32>
    %322 = vector.broadcast %289 : i32 to vector<2x128xi32>
    %323 = arith.cmpi slt, %7, %322 : vector<2x128xi32>
    %324 = arith.andi %321, %323 : vector<2x128xi1>
    %325 = vector.broadcast %286 : i32 to vector<2x128xi32>
    %326 = arith.cmpi sge, %15, %325 : vector<2x128xi32>
    %327 = arith.andi %324, %326 : vector<2x128xi1>
    %328 = vector.broadcast %292 : i32 to vector<2x128xi32>
    %329 = arith.cmpi slt, %15, %328 : vector<2x128xi32>
    %330 = arith.andi %327, %329 : vector<2x128xi1>
    %331 = vector.broadcast %295 : i32 to vector<2x128xi32>
    %332 = arith.cmpi eq, %7, %331 : vector<2x128xi32>
    %333 = vector.broadcast %298 : i32 to vector<2x128xi32>
    %334 = arith.cmpi eq, %15, %333 : vector<2x128xi32>
    %335 = arith.andi %332, %334 : vector<2x128xi1>
    %336 = vector.broadcast %315 : f32 to vector<2x128xf32>
    %337 = arith.subf %16, %336 : vector<2x128xf32>
    %338 = vector.broadcast %319 : f32 to vector<2x128xf32>
    %339 = arith.subf %17, %338 : vector<2x128xf32>
    %340 = arith.mulf %337, %337 : vector<2x128xf32>
    %341 = arith.mulf %339, %339 : vector<2x128xf32>
    %342 = arith.addf %340, %341 : vector<2x128xf32>
    %343 = math.sqrt %342 : vector<2x128xf32>
    %344 = vector.broadcast %311 : f32 to vector<2x128xf32>
    %345 = arith.mulf %343, %344 : vector<2x128xf32>
    %cst_97 = arith.constant 1.000000e+00 : f32
    %346 = vector.broadcast %cst_97 : f32 to vector<2x128xf32>
    %347 = arith.minimumf %345, %346 : vector<2x128xf32>
    %cst_98 = arith.constant 1.000000e+00 : f32
    %348 = vector.broadcast %cst_98 : f32 to vector<2x128xf32>
    %349 = arith.select %335, %348, %347 : vector<2x128xi1>, vector<2x128xf32>
    %cst_99 = arith.constant 0.000000e+00 : f32
    %350 = vector.broadcast %cst_99 : f32 to vector<2x128xf32>
    %351 = arith.select %330, %349, %350 : vector<2x128xi1>, vector<2x128xf32>
    %352 = arith.maximumf %268, %351 : vector<2x128xf32>
    %353 = arith.cmpi sgt, %292, %1 : i32
    %354 = arith.cmpi slt, %286, %3 : i32
    %355 = arith.andi %353, %354 : i1
    %356 = arith.extui %355 : i1 to i32
    %c0_i32_100 = arith.constant 0 : i32
    %357 = arith.cmpi ne, %356, %c0_i32_100 : i32
    scf.if %357 {
      %469 = arith.index_cast %301 : i32 to index
      %c0_146 = arith.constant 0 : index
      %c0_147 = arith.constant 0 : index
      %470 = vector.load %arg6[%469, %c0_146, %c0_147] : memref<4x2x128xf32, #tpu.memory_space<vmem>>, vector<1x2x128xf32>
      %471 = vector.shape_cast %470 : vector<1x2x128xf32> to vector<2x128xf32>
      %472 = arith.maximumf %471, %351 : vector<2x128xf32>
      %473 = arith.index_cast %301 : i32 to index
      %c0_148 = arith.constant 0 : index
      %c0_149 = arith.constant 0 : index
      %474 = vector.load %arg6[%473, %c0_148, %c0_149] : memref<4x2x128xf32, #tpu.memory_space<vmem>>, vector<1x2x128xf32>
      %475 = vector.shape_cast %474 : vector<1x2x128xf32> to vector<2x128xf32>
      %476 = vector.shape_cast %472 : vector<2x128xf32> to vector<1x2x128xf32>
      tpu.vector_store %arg6[%473, %c0_148, %c0_149], %476 {strides = array<i32>} : memref<4x2x128xf32, #tpu.memory_space<vmem>>, vector<1x2x128xf32>,
      %477 = arith.index_cast %301 : i32 to index
      %c0_150 = arith.constant 0 : index
      %c0_151 = arith.constant 0 : index
      %478 = vector.load %arg7[%477, %c0_150, %c0_151] : memref<4x2x128xf32, #tpu.memory_space<vmem>>, vector<1x2x128xf32>
      %479 = vector.shape_cast %478 : vector<1x2x128xf32> to vector<2x128xf32>
      %cst_152 = arith.constant 1.000000e+00 : f32
      %480 = vector.broadcast %cst_152 : f32 to vector<2x128xf32>
      %481 = arith.select %330, %480, %479 : vector<2x128xi1>, vector<2x128xf32>
      %482 = arith.index_cast %301 : i32 to index
      %c0_153 = arith.constant 0 : index
      %c0_154 = arith.constant 0 : index
      %483 = vector.load %arg7[%482, %c0_153, %c0_154] : memref<4x2x128xf32, #tpu.memory_space<vmem>>, vector<1x2x128xf32>
      %484 = vector.shape_cast %483 : vector<1x2x128xf32> to vector<2x128xf32>
      %485 = vector.shape_cast %481 : vector<2x128xf32> to vector<1x2x128xf32>
      tpu.vector_store %arg7[%482, %c0_153, %c0_154], %485 {strides = array<i32>} : memref<4x2x128xf32, #tpu.memory_space<vmem>>, vector<1x2x128xf32>,
    } else {
    }
    %358 = arith.cmpi sge, %304, %0 : i32
    %c2_i32_101 = arith.constant 2 : i32
    %359 = arith.addi %0, %c2_i32_101 : i32
    %360 = arith.cmpi slt, %304, %359 : i32
    %361 = arith.andi %358, %360 : i1
    %362 = arith.extui %361 : i1 to i32
    %c0_i32_102 = arith.constant 0 : i32
    %363 = arith.cmpi ne, %362, %c0_i32_102 : i32
    scf.if %363 {
      %469 = arith.subi %304, %0 : i32
      %470 = vector.broadcast %307 : i32 to vector<1x128xi32>
      %471 = arith.cmpi eq, %18, %470 : vector<1x128xi32>
      %c0_146 = arith.constant 0 : index
      %472 = arith.index_cast %469 : i32 to index
      %c0_147 = arith.constant 0 : index
      %473 = vector.load %arg5[%c0_146, %472, %c0_147] : memref<4x2x128xf32, #tpu.memory_space<vmem>>, vector<1x1x128xf32>
      %474 = vector.shape_cast %473 : vector<1x1x128xf32> to vector<1x128xf32>
      %cst_148 = arith.constant 0.000000e+00 : f32
      %475 = vector.broadcast %cst_148 : f32 to vector<1x128xf32>
      %476 = arith.select %471, %475, %474 : vector<1x128xi1>, vector<1x128xf32>
      %c0_149 = arith.constant 0 : index
      %477 = arith.index_cast %469 : i32 to index
      %c0_150 = arith.constant 0 : index
      %478 = vector.load %arg5[%c0_149, %477, %c0_150] : memref<4x2x128xf32, #tpu.memory_space<vmem>>, vector<1x1x128xf32>
      %479 = vector.shape_cast %478 : vector<1x1x128xf32> to vector<1x128xf32>
      %480 = vector.shape_cast %476 : vector<1x128xf32> to vector<1x1x128xf32>
      tpu.vector_store %arg5[%c0_149, %477, %c0_150], %480 {strides = array<i32>} : memref<4x2x128xf32, #tpu.memory_space<vmem>>, vector<1x1x128xf32>,
      %481 = arith.index_cast %301 : i32 to index
      %482 = arith.index_cast %469 : i32 to index
      %c0_151 = arith.constant 0 : index
      %483 = vector.load %arg5[%481, %482, %c0_151] : memref<4x2x128xf32, #tpu.memory_space<vmem>>, vector<1x1x128xf32>
      %484 = vector.shape_cast %483 : vector<1x1x128xf32> to vector<1x128xf32>
      %cst_152 = arith.constant 1.000000e+00 : f32
      %485 = vector.broadcast %cst_152 : f32 to vector<1x128xf32>
      %486 = arith.select %471, %485, %484 : vector<1x128xi1>, vector<1x128xf32>
      %487 = arith.index_cast %301 : i32 to index
      %488 = arith.index_cast %469 : i32 to index
      %c0_153 = arith.constant 0 : index
      %489 = vector.load %arg5[%487, %488, %c0_153] : memref<4x2x128xf32, #tpu.memory_space<vmem>>, vector<1x1x128xf32>
      %490 = vector.shape_cast %489 : vector<1x1x128xf32> to vector<1x128xf32>
      %491 = vector.shape_cast %486 : vector<1x128xf32> to vector<1x1x128xf32>
      tpu.vector_store %arg5[%487, %488, %c0_153], %491 {strides = array<i32>} : memref<4x2x128xf32, #tpu.memory_space<vmem>>, vector<1x1x128xf32>,
    } else {
    }
    %c4_i32_103 = arith.constant 4 : i32
    %c9_i32_104 = arith.constant 9 : i32
    %364 = arith.muli %c4_i32_103, %c9_i32_104 : i32
    %c0_i32_105 = arith.constant 0 : i32
    %365 = arith.addi %364, %c0_i32_105 : i32
    %366 = arith.index_cast %365 : i32 to index
    %367 = memref.load %arg1[%366] : memref<45xi32, #tpu.memory_space<smem>>
    %c1_i32_106 = arith.constant 1 : i32
    %368 = arith.addi %364, %c1_i32_106 : i32
    %369 = arith.index_cast %368 : i32 to index
    %370 = memref.load %arg1[%369] : memref<45xi32, #tpu.memory_space<smem>>
    %c2_i32_107 = arith.constant 2 : i32
    %371 = arith.addi %364, %c2_i32_107 : i32
    %372 = arith.index_cast %371 : i32 to index
    %373 = memref.load %arg1[%372] : memref<45xi32, #tpu.memory_space<smem>>
    %c3_i32_108 = arith.constant 3 : i32
    %374 = arith.addi %364, %c3_i32_108 : i32
    %375 = arith.index_cast %374 : i32 to index
    %376 = memref.load %arg1[%375] : memref<45xi32, #tpu.memory_space<smem>>
    %c4_i32_109 = arith.constant 4 : i32
    %377 = arith.addi %364, %c4_i32_109 : i32
    %378 = arith.index_cast %377 : i32 to index
    %379 = memref.load %arg1[%378] : memref<45xi32, #tpu.memory_space<smem>>
    %c5_i32_110 = arith.constant 5 : i32
    %380 = arith.addi %364, %c5_i32_110 : i32
    %381 = arith.index_cast %380 : i32 to index
    %382 = memref.load %arg1[%381] : memref<45xi32, #tpu.memory_space<smem>>
    %c6_i32_111 = arith.constant 6 : i32
    %383 = arith.addi %364, %c6_i32_111 : i32
    %384 = arith.index_cast %383 : i32 to index
    %385 = memref.load %arg1[%384] : memref<45xi32, #tpu.memory_space<smem>>
    %c7_i32_112 = arith.constant 7 : i32
    %386 = arith.addi %364, %c7_i32_112 : i32
    %387 = arith.index_cast %386 : i32 to index
    %388 = memref.load %arg1[%387] : memref<45xi32, #tpu.memory_space<smem>>
    %c8_i32_113 = arith.constant 8 : i32
    %389 = arith.addi %364, %c8_i32_113 : i32
    %390 = arith.index_cast %389 : i32 to index
    %391 = memref.load %arg1[%390] : memref<45xi32, #tpu.memory_space<smem>>
    %c3_i32_114 = arith.constant 3 : i32
    %392 = arith.muli %c4_i32_103, %c3_i32_114 : i32
    %c0_i32_115 = arith.constant 0 : i32
    %393 = arith.addi %392, %c0_i32_115 : i32
    %394 = arith.index_cast %393 : i32 to index
    %395 = memref.load %arg2[%394] : memref<15xf32, #tpu.memory_space<smem>>
    %c3_i32_116 = arith.constant 3 : i32
    %396 = arith.muli %c4_i32_103, %c3_i32_116 : i32
    %c1_i32_117 = arith.constant 1 : i32
    %397 = arith.addi %396, %c1_i32_117 : i32
    %398 = arith.index_cast %397 : i32 to index
    %399 = memref.load %arg2[%398] : memref<15xf32, #tpu.memory_space<smem>>
    %c3_i32_118 = arith.constant 3 : i32
    %400 = arith.muli %c4_i32_103, %c3_i32_118 : i32
    %c2_i32_119 = arith.constant 2 : i32
    %401 = arith.addi %400, %c2_i32_119 : i32
    %402 = arith.index_cast %401 : i32 to index
    %403 = memref.load %arg2[%402] : memref<15xf32, #tpu.memory_space<smem>>
    %404 = vector.broadcast %367 : i32 to vector<2x128xi32>
    %405 = arith.cmpi sge, %7, %404 : vector<2x128xi32>
    %406 = vector.broadcast %373 : i32 to vector<2x128xi32>
    %407 = arith.cmpi slt, %7, %406 : vector<2x128xi32>
    %408 = arith.andi %405, %407 : vector<2x128xi1>
    %409 = vector.broadcast %370 : i32 to vector<2x128xi32>
    %410 = arith.cmpi sge, %15, %409 : vector<2x128xi32>
    %411 = arith.andi %408, %410 : vector<2x128xi1>
    %412 = vector.broadcast %376 : i32 to vector<2x128xi32>
    %413 = arith.cmpi slt, %15, %412 : vector<2x128xi32>
    %414 = arith.andi %411, %413 : vector<2x128xi1>
    %415 = vector.broadcast %379 : i32 to vector<2x128xi32>
    %416 = arith.cmpi eq, %7, %415 : vector<2x128xi32>
    %417 = vector.broadcast %382 : i32 to vector<2x128xi32>
    %418 = arith.cmpi eq, %15, %417 : vector<2x128xi32>
    %419 = arith.andi %416, %418 : vector<2x128xi1>
    %420 = vector.broadcast %399 : f32 to vector<2x128xf32>
    %421 = arith.subf %16, %420 : vector<2x128xf32>
    %422 = vector.broadcast %403 : f32 to vector<2x128xf32>
    %423 = arith.subf %17, %422 : vector<2x128xf32>
    %424 = arith.mulf %421, %421 : vector<2x128xf32>
    %425 = arith.mulf %423, %423 : vector<2x128xf32>
    %426 = arith.addf %424, %425 : vector<2x128xf32>
    %427 = math.sqrt %426 : vector<2x128xf32>
    %428 = vector.broadcast %395 : f32 to vector<2x128xf32>
    %429 = arith.mulf %427, %428 : vector<2x128xf32>
    %cst_120 = arith.constant 1.000000e+00 : f32
    %430 = vector.broadcast %cst_120 : f32 to vector<2x128xf32>
    %431 = arith.minimumf %429, %430 : vector<2x128xf32>
    %cst_121 = arith.constant 1.000000e+00 : f32
    %432 = vector.broadcast %cst_121 : f32 to vector<2x128xf32>
    %433 = arith.select %419, %432, %431 : vector<2x128xi1>, vector<2x128xf32>
    %cst_122 = arith.constant 0.000000e+00 : f32
    %434 = vector.broadcast %cst_122 : f32 to vector<2x128xf32>
    %435 = arith.select %414, %433, %434 : vector<2x128xi1>, vector<2x128xf32>
    %436 = arith.maximumf %352, %435 : vector<2x128xf32>
    %437 = arith.cmpi sgt, %376, %1 : i32
    %438 = arith.cmpi slt, %370, %3 : i32
    %439 = arith.andi %437, %438 : i1
    %440 = arith.extui %439 : i1 to i32
    %c0_i32_123 = arith.constant 0 : i32
    %441 = arith.cmpi ne, %440, %c0_i32_123 : i32
    scf.if %441 {
      %469 = arith.index_cast %385 : i32 to index
      %c0_146 = arith.constant 0 : index
      %c0_147 = arith.constant 0 : index
      %470 = vector.load %arg6[%469, %c0_146, %c0_147] : memref<4x2x128xf32, #tpu.memory_space<vmem>>, vector<1x2x128xf32>
      %471 = vector.shape_cast %470 : vector<1x2x128xf32> to vector<2x128xf32>
      %472 = arith.maximumf %471, %435 : vector<2x128xf32>
      %473 = arith.index_cast %385 : i32 to index
      %c0_148 = arith.constant 0 : index
      %c0_149 = arith.constant 0 : index
      %474 = vector.load %arg6[%473, %c0_148, %c0_149] : memref<4x2x128xf32, #tpu.memory_space<vmem>>, vector<1x2x128xf32>
      %475 = vector.shape_cast %474 : vector<1x2x128xf32> to vector<2x128xf32>
      %476 = vector.shape_cast %472 : vector<2x128xf32> to vector<1x2x128xf32>
      tpu.vector_store %arg6[%473, %c0_148, %c0_149], %476 {strides = array<i32>} : memref<4x2x128xf32, #tpu.memory_space<vmem>>, vector<1x2x128xf32>,
      %477 = arith.index_cast %385 : i32 to index
      %c0_150 = arith.constant 0 : index
      %c0_151 = arith.constant 0 : index
      %478 = vector.load %arg7[%477, %c0_150, %c0_151] : memref<4x2x128xf32, #tpu.memory_space<vmem>>, vector<1x2x128xf32>
      %479 = vector.shape_cast %478 : vector<1x2x128xf32> to vector<2x128xf32>
      %cst_152 = arith.constant 1.000000e+00 : f32
      %480 = vector.broadcast %cst_152 : f32 to vector<2x128xf32>
      %481 = arith.select %414, %480, %479 : vector<2x128xi1>, vector<2x128xf32>
      %482 = arith.index_cast %385 : i32 to index
      %c0_153 = arith.constant 0 : index
      %c0_154 = arith.constant 0 : index
      %483 = vector.load %arg7[%482, %c0_153, %c0_154] : memref<4x2x128xf32, #tpu.memory_space<vmem>>, vector<1x2x128xf32>
      %484 = vector.shape_cast %483 : vector<1x2x128xf32> to vector<2x128xf32>
      %485 = vector.shape_cast %481 : vector<2x128xf32> to vector<1x2x128xf32>
      tpu.vector_store %arg7[%482, %c0_153, %c0_154], %485 {strides = array<i32>} : memref<4x2x128xf32, #tpu.memory_space<vmem>>, vector<1x2x128xf32>,
    } else {
    }
    %442 = arith.cmpi sge, %388, %0 : i32
    %c2_i32_124 = arith.constant 2 : i32
    %443 = arith.addi %0, %c2_i32_124 : i32
    %444 = arith.cmpi slt, %388, %443 : i32
    %445 = arith.andi %442, %444 : i1
    %446 = arith.extui %445 : i1 to i32
    %c0_i32_125 = arith.constant 0 : i32
    %447 = arith.cmpi ne, %446, %c0_i32_125 : i32
    scf.if %447 {
      %469 = arith.subi %388, %0 : i32
      %470 = vector.broadcast %391 : i32 to vector<1x128xi32>
      %471 = arith.cmpi eq, %18, %470 : vector<1x128xi32>
      %c0_146 = arith.constant 0 : index
      %472 = arith.index_cast %469 : i32 to index
      %c0_147 = arith.constant 0 : index
      %473 = vector.load %arg5[%c0_146, %472, %c0_147] : memref<4x2x128xf32, #tpu.memory_space<vmem>>, vector<1x1x128xf32>
      %474 = vector.shape_cast %473 : vector<1x1x128xf32> to vector<1x128xf32>
      %cst_148 = arith.constant 0.000000e+00 : f32
      %475 = vector.broadcast %cst_148 : f32 to vector<1x128xf32>
      %476 = arith.select %471, %475, %474 : vector<1x128xi1>, vector<1x128xf32>
      %c0_149 = arith.constant 0 : index
      %477 = arith.index_cast %469 : i32 to index
      %c0_150 = arith.constant 0 : index
      %478 = vector.load %arg5[%c0_149, %477, %c0_150] : memref<4x2x128xf32, #tpu.memory_space<vmem>>, vector<1x1x128xf32>
      %479 = vector.shape_cast %478 : vector<1x1x128xf32> to vector<1x128xf32>
      %480 = vector.shape_cast %476 : vector<1x128xf32> to vector<1x1x128xf32>
      tpu.vector_store %arg5[%c0_149, %477, %c0_150], %480 {strides = array<i32>} : memref<4x2x128xf32, #tpu.memory_space<vmem>>, vector<1x1x128xf32>,
      %481 = arith.index_cast %385 : i32 to index
      %482 = arith.index_cast %469 : i32 to index
      %c0_151 = arith.constant 0 : index
      %483 = vector.load %arg5[%481, %482, %c0_151] : memref<4x2x128xf32, #tpu.memory_space<vmem>>, vector<1x1x128xf32>
      %484 = vector.shape_cast %483 : vector<1x1x128xf32> to vector<1x128xf32>
      %cst_152 = arith.constant 1.000000e+00 : f32
      %485 = vector.broadcast %cst_152 : f32 to vector<1x128xf32>
      %486 = arith.select %471, %485, %484 : vector<1x128xi1>, vector<1x128xf32>
      %487 = arith.index_cast %385 : i32 to index
      %488 = arith.index_cast %469 : i32 to index
      %c0_153 = arith.constant 0 : index
      %489 = vector.load %arg5[%487, %488, %c0_153] : memref<4x2x128xf32, #tpu.memory_space<vmem>>, vector<1x1x128xf32>
      %490 = vector.shape_cast %489 : vector<1x1x128xf32> to vector<1x128xf32>
      %491 = vector.shape_cast %486 : vector<1x128xf32> to vector<1x1x128xf32>
      tpu.vector_store %arg5[%487, %488, %c0_153], %491 {strides = array<i32>} : memref<4x2x128xf32, #tpu.memory_space<vmem>>, vector<1x1x128xf32>,
    } else {
    }
    %c5_i32_126 = arith.constant 5 : i32
    %cst_127 = arith.constant 0.000000e+00 : f32
    %448 = vector.broadcast %cst_127 : f32 to vector<2x128xf32>
    %449 = arith.cmpf ogt, %436, %448 : vector<2x128xf32>
    %cst_128 = arith.constant 0.000000e+00 : f32
    %cst_129 = arith.constant 1.000000e+00 : f32
    %450 = vector.broadcast %cst_128 : f32 to vector<2x128xf32>
    %451 = vector.broadcast %cst_129 : f32 to vector<2x128xf32>
    %452 = arith.select %449, %450, %451 : vector<2x128xi1>, vector<2x128xf32>
    %c0_130 = arith.constant 0 : index
    %c0_131 = arith.constant 0 : index
    %c0_132 = arith.constant 0 : index
    %453 = vector.load %arg7[%c0_130, %c0_131, %c0_132] : memref<4x2x128xf32, #tpu.memory_space<vmem>>, vector<1x2x128xf32>
    %454 = vector.shape_cast %453 : vector<1x2x128xf32> to vector<2x128xf32>
    %455 = vector.shape_cast %452 : vector<2x128xf32> to vector<1x2x128xf32>
    tpu.vector_store %arg7[%c0_130, %c0_131, %c0_132], %455 {strides = array<i32>} : memref<4x2x128xf32, #tpu.memory_space<vmem>>, vector<1x2x128xf32>,
    %cst_133 = arith.constant 0.000000e+00 : f32
    %456 = vector.broadcast %cst_133 : f32 to vector<2x128xf32>
    %457 = arith.cmpf oeq, %436, %456 : vector<2x128xf32>
    %cst_134 = arith.constant 1.000000e+00 : f32
    %458 = vector.broadcast %cst_134 : f32 to vector<2x128xf32>
    %459 = arith.select %457, %458, %436 : vector<2x128xi1>, vector<2x128xf32>
    %c0_135 = arith.constant 0 : index
    %c0_136 = arith.constant 0 : index
    %c0_137 = arith.constant 0 : index
    %460 = vector.load %arg6[%c0_135, %c0_136, %c0_137] : memref<4x2x128xf32, #tpu.memory_space<vmem>>, vector<1x2x128xf32>
    %461 = vector.shape_cast %460 : vector<1x2x128xf32> to vector<2x128xf32>
    %462 = vector.shape_cast %459 : vector<2x128xf32> to vector<1x2x128xf32>
    tpu.vector_store %arg6[%c0_135, %c0_136, %c0_137], %462 {strides = array<i32>} : memref<4x2x128xf32, #tpu.memory_space<vmem>>, vector<1x2x128xf32>,
    %c1_138 = arith.constant 1 : index
    %c0_139 = arith.constant 0 : index
    %c0_140 = arith.constant 0 : index
    %463 = vector.load %arg6[%c1_138, %c0_139, %c0_140] : memref<4x2x128xf32, #tpu.memory_space<vmem>>, vector<3x2x128xf32>
    %cst_141 = arith.constant 0.000000e+00 : f32
    %464 = vector.broadcast %cst_141 : f32 to vector<3x2x128xf32>
    %465 = arith.cmpf oeq, %463, %464 : vector<3x2x128xf32>
    %cst_142 = arith.constant 1.000000e+00 : f32
    %466 = vector.broadcast %cst_142 : f32 to vector<3x2x128xf32>
    %467 = arith.select %465, %466, %463 : vector<3x2x128xi1>, vector<3x2x128xf32>
    %c1_143 = arith.constant 1 : index
    %c0_144 = arith.constant 0 : index
    %c0_145 = arith.constant 0 : index
    %468 = vector.load %arg6[%c1_143, %c0_144, %c0_145] : memref<4x2x128xf32, #tpu.memory_space<vmem>>, vector<3x2x128xf32>
    tpu.vector_store %arg6[%c1_143, %c0_144, %c0_145], %467 {strides = array<i32>} : memref<4x2x128xf32, #tpu.memory_space<vmem>>, vector<3x2x128xf32>,
    return
  }
  func.func @transform_0(%arg0: i32) -> i32 {
    %c0_i32 = arith.constant 0 : i32
    %c0_i32_0 = arith.constant 0 : i32
    return %c0_i32 : i32
  }
  func.func @transform_1(%arg0: i32) -> i32 {
    %c0_i32 = arith.constant 0 : i32
    %c0_i32_0 = arith.constant 0 : i32
    return %c0_i32 : i32
  }
  func.func @transform_2(%arg0: i32) -> (i32, i32) {
    %c0_i32 = arith.constant 0 : i32
    %c0_i32_0 = arith.constant 0 : i32
    %c0_i32_1 = arith.constant 0 : i32
    return %c0_i32, %c0_i32_0 : i32, i32
  }
  func.func @transform_3(%arg0: i32) -> (i32, i32) {
    %c0_i32 = arith.constant 0 : i32
    %c0_i32_0 = arith.constant 0 : i32
    %c0_i32_1 = arith.constant 0 : i32
    return %c0_i32, %c0_i32_0 : i32, i32
  }
  func.func @transform_4(%arg0: i32) -> (i32, i32, i32) {
    %c0_i32 = arith.constant 0 : i32
    %c0_i32_0 = arith.constant 0 : i32
    %c0_i32_1 = arith.constant 0 : i32
    return %c0_i32, %arg0, %c0_i32_0 : i32, i32, i32
  }
  func.func @transform_5(%arg0: i32) -> (i32, i32, i32) {
    %c0_i32 = arith.constant 0 : i32
    %c0_i32_0 = arith.constant 0 : i32
    %c0_i32_1 = arith.constant 0 : i32
    return %c0_i32, %arg0, %c0_i32_0 : i32, i32, i32
  }
  func.func @transform_6(%arg0: i32) -> (i32, i32, i32) {
    %c0_i32 = arith.constant 0 : i32
    %c0_i32_0 = arith.constant 0 : i32
    %c0_i32_1 = arith.constant 0 : i32
    return %c0_i32, %arg0, %c0_i32_0 : i32, i32, i32
  }
}

</mosaic_0001>

<llo_original>
// kernel: tpu_custom_call.1
$region0: #{tpu_custom_call.1}
  #allocation0 [shape = 'u32[]', space=smem, size = 0x4, offset = 0x4, fixed_abs, tag = 'smem constant byte address 0x4 - core index']
  #allocation1 [shape = 'u32[144,128]{1,0:T(1,128)}', space=vmem, size = 0x12000, scoped, tag = 'internal scratch']
  %s0 = inlined_call_operand.hbm [shape: s32[45], index: 0, kind: input, shape index: {}]
  %s1 = inlined_call_operand.vmem [shape: f32[15], index: 1, kind: input, shape index: {}]
  %s2 = inlined_call_operand.vmem [shape: s32[1,128], index: 2, kind: input, shape index: {}]
  %s3 = inlined_call_operand.vmem [shape: s32[1,128], index: 3, kind: input, shape index: {}]
  %s4 = inlined_call_operand.hbm [shape: f32[4,2,128], index: 4, kind: output, shape index: {0}]
  %s5 = inlined_call_operand.hbm [shape: f32[4,2,128], index: 5, kind: output, shape index: {1}]
  %s6 = inlined_call_operand.hbm [shape: f32[4,2,128], index: 6, kind: output, shape index: {2}]
  %7 = xla_tuple %s4, %s5, %s6
  %s8 = sld [smem:[#allocation0]]
  $region90: #{tpu_custom_call.1} parent=0
    _
  %s10 = ssub.s32 1, %s8
  %s11 = scalar_select 0, %s10, %s8
  $region1: #{tpu_custom_call.1} parent=0
    #allocation2 [shape = 'u8[512]{0}', space=smem, size = 0x200, scoped, tag = 'input window, operand 0, single buffered']
    #allocation3 [shape = 's32[1]{0}', space=sflag, size = 0x4, scoped, tag = 'scoped memory for tpu_custom_call.1']
    #allocation4 [shape = 's32[1]{0}', space=sflag, size = 0x4, scoped, tag = 'scoped memory for tpu_custom_call.1']
    #allocation5 [shape = 's32[1]{0}', space=sflag, size = 0x4, scoped, tag = 'scoped memory for tpu_custom_call.1']
    #allocation6 [shape = 'u8[512]{0}', space=smem, size = 0x200, scoped, tag = 'input window, operand 1, single buffered']
    #allocation7 [shape = 'u8[4096]{0}', space=vmem, size = 0x1000, scoped, tag = 'output window, operand 0, single buffered']
    #allocation8 [shape = 'u8[4096]{0}', space=vmem, size = 0x1000, scoped, tag = 'output window, operand 1, single buffered']
    #allocation9 [shape = 's32[1]{0}', space=sflag, size = 0x4, scoped, tag = 'scoped memory for tpu_custom_call.1']
    #allocation10 [shape = 'u8[4096]{0}', space=vmem, size = 0x1000, scoped, tag = 'output window, operand 2, single buffered']
    %12 = vsyncpa [#allocation4], 0
    %13 = vsyncpa [#allocation5], 0
    %14 = vsyncpa [#allocation3], 0
    %15 = vsyncpa [#allocation9], 0
    // Predicated region
    $region2: #{tpu_custom_call.1} parent=1 // pred_check
      _
    $region3: #{tpu_custom_call.1} parent=1 // pred_check_branch
      %17 = sbr.rel (0) target = $region5
    $region4: #{tpu_custom_call.1} parent=1 // pred_region
      %s19 = ssub.s32 16, 16
      %20 = vsyncadd [#allocation4], %s19
      %23 = dma.hbm_to_smem %s0, 16, [#allocation2], [#allocation4]
    $region5: #{tpu_custom_call.1} parent=1 // pred_fallthru
      _
    // Predicated region
    $region6: #{tpu_custom_call.1} parent=1 // pred_check
      _
    $region7: #{tpu_custom_call.1} parent=1 // pred_check_branch
      %25 = sbr.rel (0) target = $region9
    $region8: #{tpu_custom_call.1} parent=1 // pred_region
      %s27 = ssub.s32 16, 16
      %28 = vsyncadd [#allocation5], %s27
      %s30 = sshll.u32 %s1, 4
      %s31 = int_to_ptr.vmem [resolvable:$true] %s30
      %33 = dma.vmem_to_smem %s31, 16, [#allocation6], [#allocation5]
    $region9: #{tpu_custom_call.1} parent=1 // pred_fallthru
      _
    // Predicated region
    $region10: #{tpu_custom_call.1} parent=1 // pred_check
      _
    $region11: #{tpu_custom_call.1} parent=1 // pred_check_branch
      %35 = sbr.rel (0) target = $region13
    $region12: #{tpu_custom_call.1} parent=1 // pred_region
      _
    $region13: #{tpu_custom_call.1} parent=1 // pred_fallthru
      _
    // Predicated region
    $region14: #{tpu_custom_call.1} parent=1 // pred_check
      _
    $region15: #{tpu_custom_call.1} parent=1 // pred_check_branch
      %37 = sbr.rel (0) target = $region17
    $region16: #{tpu_custom_call.1} parent=1 // pred_region
      _
    $region17: #{tpu_custom_call.1} parent=1 // pred_fallthru
      _
    // Predicated region
    $region18: #{tpu_custom_call.1} parent=1 // pred_check
      _
    $region19: #{tpu_custom_call.1} parent=1 // pred_check_branch
      %39 = sbr.rel (0) target = $region21
    $region20: #{tpu_custom_call.1} parent=1 // pred_region
      %40 = dma.done [#allocation4], 16
    $region21: #{tpu_custom_call.1} parent=1 // pred_fallthru
      _
    // Predicated region
    $region22: #{tpu_custom_call.1} parent=1 // pred_check
      _
    $region23: #{tpu_custom_call.1} parent=1 // pred_check_branch
      %42 = sbr.rel (0) target = $region25
    $region24: #{tpu_custom_call.1} parent=1 // pred_region
      %43 = dma.done [#allocation5], 16
    $region25: #{tpu_custom_call.1} parent=1 // pred_fallthru
      _
    %44 = sfence
    %s45 = smul.u32 0, 2
    %s46 = smul.u32 0, 16
    %s47 = sadd.s32 %s45, 2
    %s48 = smul.u32 %s47, 8
    %v49 = vlaneseq
    %v50 = vshrl.u32 %v49, 7
    %v51 = vld [vmem:[%s2] sm:$0x1]
    %v52 = vlaneseq
    %v53 = vshrl.u32 %v52, 7
    %v54 = vsub.s32 0, %v53
    %v55 = vrot.slane %v51, %v54
    %v56 = vstv %s45
    %v57 = vadd.s32 %v56, %v50
    %v58 = vmul.u32 %v57, 8
    %v59 = vld [vmem:[%s3] sm:$0x1]
    %v60 = vlaneseq
    %v61 = vshrl.u32 %v60, 7
    %v62 = vsub.s32 0, %v61
    %v63 = vrot.slane %v59, %v62
    %v64 = vadd.s32 %v58, %v63
    %v65 = vcvt.s32.f32 %v55
    %v66 = vcvt.s32.f32 %v64
    %v67 = vlaneseq
    %v68 = vand.u32 %v67, 127
    %69 = vst [vmem:[#allocation7] sm:$0x3] 1.0
    %s70 = scalar_lea.vmem [#allocation7], 2
    %71 = vst [vmem:[%s70] sm:$0x3] 0.0
    %72 = vst [vmem:[%s70 + $0x2] sm:$0x3] 0.0
    %73 = vst [vmem:[%s70 + $0x4] sm:$0x3] 0.0
    %s74 = scalar_lea.vmem [#allocation10], 2
    %75 = vst [vmem:[%s74] sm:$0x3] 0.0
    %76 = vst [vmem:[%s74 + $0x2] sm:$0x3] 0.0
    %77 = vst [vmem:[%s74 + $0x4] sm:$0x3] 0.0
    %s78 = scalar_lea.vmem [#allocation8], 2
    %79 = vst [vmem:[%s78] sm:$0x3] 0.0
    %80 = vst [vmem:[%s78 + $0x2] sm:$0x3] 0.0
    %81 = vst [vmem:[%s78 + $0x4] sm:$0x3] 0.0
    %s82 = sld [smem:[#allocation2]]
    %s83 = sld [smem:[#allocation2 + $0x1]]
    %s84 = sld [smem:[#allocation2 + $0x2]]
    %s85 = sld [smem:[#allocation2 + $0x3]]
    %s86 = sld [smem:[#allocation2 + $0x4]]
    %s87 = sld [smem:[#allocation2 + $0x5]]
    %s88 = sld [smem:[#allocation2 + $0x6]]
    %s89 = sld [smem:[#allocation2 + $0x7]]
    %s90 = sld [smem:[#allocation2 + $0x8]]
    %s91 = sld [smem:[#allocation6]]
    %s92 = sld [smem:[#allocation6 + $0x1]]
    %s93 = sld [smem:[#allocation6 + $0x2]]
    %v94 = vstv %s82
    %vm95 = vcmp.ge.s32.totalorder %v55, %v94
    %v96 = vstv %s84
    %vm97 = vcmp.lt.s32.totalorder %v55, %v96
    %vm98 = vmand %vm95, %vm97
    %v99 = vstv %s83
    %vm100 = vcmp.ge.s32.totalorder %v64, %v99
    %vm101 = vmand %vm98, %vm100
    %v102 = vstv %s85
    %vm103 = vcmp.lt.s32.totalorder %v64, %v102
    %vm104 = vmand %vm101, %vm103
    %v105 = vstv %s86
    %vm106 = vcmp.eq.s32.totalorder %v55, %v105
    %v107 = vstv %s87
    %vm108 = vcmp.eq.s32.totalorder %v64, %v107
    %vm109 = vmand %vm106, %vm108
    %v110 = vstv %s92
    %v111 = vsub.f32 %v65, %v110
    %v112 = vstv %s93
    %v113 = vsub.f32 %v66, %v112
    %v114 = vmul.f32 %v111, %v111
    %v115 = vmul.f32 %v113, %v113
    %v116 = vadd.f32 %v114, %v115
    %v117 = vrsqrt.pop %v116
    %v118 = vmul.f32 %v116, %v117
    %vm119 = vcmp.eq.f32.partialorder %v116, inf
    %v120 = vsel %vm119, %v116, %v118
    %vm121 = vcmp.eq.f32.partialorder %v116, 0.0
    %v122 = vand.u32 %v116, 2147483648
    %v123 = vsel %vm121, %v122, %v120
    %v124 = vstv %s91
    %v125 = vmul.f32 %v123, %v124
    %v126 = vmin.f32 %v125, 1.0
    %v127 = vsel %vm109, 1.0, %v126
    %v128 = vsel %vm104, %v127, 0.0
    %v129 = vmax.f32 %v128, 0.0
    %p130 = scmp.gt.s32.totalorder %s85, %s46
    %p131 = scmp.lt.s32.totalorder %s83, %s48
    %p132 = pnand %p130, %p131
    %p133 = pneg %p132
    // Predicated region
    $region26: #{tpu_custom_call.1} parent=1 // pred_check
      _
    $region27: #{tpu_custom_call.1} parent=1 // pred_check_branch
      %135 = sbr.rel (%p132) target = $region29
    $region28: #{tpu_custom_call.1} parent=1 // pred_region
      %s136 = smul.u32 %s88, 2
      %s137 = scalar_lea.vmem [#allocation8], %s136
      %v138 = vld [vmem:[%s137] sm:$0x3]
      %v139 = vmax.f32 %v138, %v128
      %140 = vst [vmem:[%s137] sm:$0x3] %v139
      %s141 = scalar_lea.vmem [#allocation10], %s136
      %v142 = vld [vmem:[%s141] sm:$0x3]
      %v143 = vsel %vm104, 1.0, %v142
      %144 = vst [vmem:[%s141] sm:$0x3] %v143
    $region29: #{tpu_custom_call.1} parent=1 // pred_fallthru
      _
    %p145 = scmp.ge.s32.totalorder %s89, %s45
    %p146 = scmp.lt.s32.totalorder %s89, %s47
    %p147 = pnand %p145, %p146
    %p148 = pneg %p147
    // Predicated region
    $region30: #{tpu_custom_call.1} parent=1 // pred_check
      _
    $region31: #{tpu_custom_call.1} parent=1 // pred_check_branch
      %150 = sbr.rel (%p147) target = $region33
    $region32: #{tpu_custom_call.1} parent=1 // pred_region
      %s151 = ssub.s32 %s89, %s45
      %v152 = vstv %s90
      %vm153 = vcmp.eq.s32.totalorder %v68, %v152
      %s154 = scalar_lea.vmem [#allocation7], %s151
      %v155 = vld [vmem:[%s154] sm:$0x1]
      %v156 = vsel %vm153, 0.0, %v155
      %157 = vst [vmem:[%s154] sm:$0x1] %v156
      %s158 = smul.u32 %s88, 2
      %s159 = sadd.s32 %s151, %s158
      %s160 = scalar_lea.vmem [#allocation7], %s159
      %v161 = vld [vmem:[%s160] sm:$0x1]
      %v162 = vsel %vm153, 1.0, %v161
      %163 = vst [vmem:[%s160] sm:$0x1] %v162
    $region33: #{tpu_custom_call.1} parent=1 // pred_fallthru
      _
    %s164 = sld [smem:[#allocation2 + $0x9]]
    %s165 = sld [smem:[#allocation2 + $0xa]]
    %s166 = sld [smem:[#allocation2 + $0xb]]
    %s167 = sld [smem:[#allocation2 + $0xc]]
    %s168 = sld [smem:[#allocation2 + $0xd]]
    %s169 = sld [smem:[#allocation2 + $0xe]]
    %s170 = sld [smem:[#allocation2 + $0xf]]
    %s171 = sld [smem:[#allocation2 + $0x10]]
    %s172 = sld [smem:[#allocation2 + $0x11]]
    %s173 = sld [smem:[#allocation6 + $0x3]]
    %s174 = sld [smem:[#allocation6 + $0x4]]
    %s175 = sld [smem:[#allocation6 + $0x5]]
    %v176 = vstv %s164
    %vm177 = vcmp.ge.s32.totalorder %v55, %v176
    %v178 = vstv %s166
    %vm179 = vcmp.lt.s32.totalorder %v55, %v178
    %vm180 = vmand %vm177, %vm179
    %v181 = vstv %s165
    %vm182 = vcmp.ge.s32.totalorder %v64, %v181
    %vm183 = vmand %vm180, %vm182
    %v184 = vstv %s167
    %vm185 = vcmp.lt.s32.totalorder %v64, %v184
    %vm186 = vmand %vm183, %vm185
    %v187 = vstv %s168
    %vm188 = vcmp.eq.s32.totalorder %v55, %v187
    %v189 = vstv %s169
    %vm190 = vcmp.eq.s32.totalorder %v64, %v189
    %vm191 = vmand %vm188, %vm190
    %v192 = vstv %s174
    %v193 = vsub.f32 %v65, %v192
    %v194 = vstv %s175
    %v195 = vsub.f32 %v66, %v194
    %v196 = vmul.f32 %v193, %v193
    %v197 = vmul.f32 %v195, %v195
    %v198 = vadd.f32 %v196, %v197
    %v199 = vrsqrt.pop %v198
    %v200 = vmul.f32 %v198, %v199
    %vm201 = vcmp.eq.f32.partialorder %v198, inf
    %v202 = vsel %vm201, %v198, %v200
    %vm203 = vcmp.eq.f32.partialorder %v198, 0.0
    %v204 = vand.u32 %v198, 2147483648
    %v205 = vsel %vm203, %v204, %v202
    %v206 = vstv %s173
    %v207 = vmul.f32 %v205, %v206
    %v208 = vmin.f32 %v207, 1.0
    %v209 = vsel %vm191, 1.0, %v208
    %v210 = vsel %vm186, %v209, 0.0
    %v211 = vmax.f32 %v129, %v210
    %p212 = scmp.gt.s32.totalorder %s167, %s46
    %p213 = scmp.lt.s32.totalorder %s165, %s48
    %p214 = pnand %p212, %p213
    %p215 = pneg %p214
    // Predicated region
    $region34: #{tpu_custom_call.1} parent=1 // pred_check
      _
    $region35: #{tpu_custom_call.1} parent=1 // pred_check_branch
      %217 = sbr.rel (%p214) target = $region37
    $region36: #{tpu_custom_call.1} parent=1 // pred_region
      %s218 = smul.u32 %s170, 2
      %s219 = scalar_lea.vmem [#allocation8], %s218
      %v220 = vld [vmem:[%s219] sm:$0x3]
      %v221 = vmax.f32 %v220, %v210
      %222 = vst [vmem:[%s219] sm:$0x3] %v221
      %s223 = scalar_lea.vmem [#allocation10], %s218
      %v224 = vld [vmem:[%s223] sm:$0x3]
      %v225 = vsel %vm186, 1.0, %v224
      %226 = vst [vmem:[%s223] sm:$0x3] %v225
    $region37: #{tpu_custom_call.1} parent=1 // pred_fallthru
      _
    %p227 = scmp.ge.s32.totalorder %s171, %s45
    %p228 = scmp.lt.s32.totalorder %s171, %s47
    %p229 = pnand %p227, %p228
    %p230 = pneg %p229
    // Predicated region
    $region38: #{tpu_custom_call.1} parent=1 // pred_check
      _
    $region39: #{tpu_custom_call.1} parent=1 // pred_check_branch
      %232 = sbr.rel (%p229) target = $region41
    $region40: #{tpu_custom_call.1} parent=1 // pred_region
      %s233 = ssub.s32 %s171, %s45
      %v234 = vstv %s172
      %vm235 = vcmp.eq.s32.totalorder %v68, %v234
      %s236 = scalar_lea.vmem [#allocation7], %s233
      %v237 = vld [vmem:[%s236] sm:$0x1]
      %v238 = vsel %vm235, 0.0, %v237
      %239 = vst [vmem:[%s236] sm:$0x1] %v238
      %s240 = smul.u32 %s170, 2
      %s241 = sadd.s32 %s233, %s240
      %s242 = scalar_lea.vmem [#allocation7], %s241
      %v243 = vld [vmem:[%s242] sm:$0x1]
      %v244 = vsel %vm235, 1.0, %v243
      %245 = vst [vmem:[%s242] sm:$0x1] %v244
    $region41: #{tpu_custom_call.1} parent=1 // pred_fallthru
      _
    %s246 = sld [smem:[#allocation2 + $0x12]]
    %s247 = sld [smem:[#allocation2 + $0x13]]
    %s248 = sld [smem:[#allocation2 + $0x14]]
    %s249 = sld [smem:[#allocation2 + $0x15]]
    %s250 = sld [smem:[#allocation2 + $0x16]]
    %s251 = sld [smem:[#allocation2 + $0x17]]
    %s252 = sld [smem:[#allocation2 + $0x18]]
    %s253 = sld [smem:[#allocation2 + $0x19]]
    %s254 = sld [smem:[#allocation2 + $0x1a]]
    %s255 = sld [smem:[#allocation6 + $0x6]]
    %s256 = sld [smem:[#allocation6 + $0x7]]
    %s257 = sld [smem:[#allocation6 + $0x8]]
    %v258 = vstv %s246
    %vm259 = vcmp.ge.s32.totalorder %v55, %v258
    %v260 = vstv %s248
    %vm261 = vcmp.lt.s32.totalorder %v55, %v260
    %vm262 = vmand %vm259, %vm261
    %v263 = vstv %s247
    %vm264 = vcmp.ge.s32.totalorder %v64, %v263
    %vm265 = vmand %vm262, %vm264
    %v266 = vstv %s249
    %vm267 = vcmp.lt.s32.totalorder %v64, %v266
    %vm268 = vmand %vm265, %vm267
    %v269 = vstv %s250
    %vm270 = vcmp.eq.s32.totalorder %v55, %v269
    %v271 = vstv %s251
    %vm272 = vcmp.eq.s32.totalorder %v64, %v271
    %vm273 = vmand %vm270, %vm272
    %v274 = vstv %s256
    %v275 = vsub.f32 %v65, %v274
    %v276 = vstv %s257
    %v277 = vsub.f32 %v66, %v276
    %v278 = vmul.f32 %v275, %v275
    %v279 = vmul.f32 %v277, %v277
    %v280 = vadd.f32 %v278, %v279
    %v281 = vrsqrt.pop %v280
    %v282 = vmul.f32 %v280, %v281
    %vm283 = vcmp.eq.f32.partialorder %v280, inf
    %v284 = vsel %vm283, %v280, %v282
    %vm285 = vcmp.eq.f32.partialorder %v280, 0.0
    %v286 = vand.u32 %v280, 2147483648
    %v287 = vsel %vm285, %v286, %v284
    %v288 = vstv %s255
    %v289 = vmul.f32 %v287, %v288
    %v290 = vmin.f32 %v289, 1.0
    %v291 = vsel %vm273, 1.0, %v290
    %v292 = vsel %vm268, %v291, 0.0
    %v293 = vmax.f32 %v211, %v292
    %p294 = scmp.gt.s32.totalorder %s249, %s46
    %p295 = scmp.lt.s32.totalorder %s247, %s48
    %p296 = pnand %p294, %p295
    %p297 = pneg %p296
    // Predicated region
    $region42: #{tpu_custom_call.1} parent=1 // pred_check
      _
    $region43: #{tpu_custom_call.1} parent=1 // pred_check_branch
      %299 = sbr.rel (%p296) target = $region45
    $region44: #{tpu_custom_call.1} parent=1 // pred_region
      %s300 = smul.u32 %s252, 2
      %s301 = scalar_lea.vmem [#allocation8], %s300
      %v302 = vld [vmem:[%s301] sm:$0x3]
      %v303 = vmax.f32 %v302, %v292
      %304 = vst [vmem:[%s301] sm:$0x3] %v303
      %s305 = scalar_lea.vmem [#allocation10], %s300
      %v306 = vld [vmem:[%s305] sm:$0x3]
      %v307 = vsel %vm268, 1.0, %v306
      %308 = vst [vmem:[%s305] sm:$0x3] %v307
    $region45: #{tpu_custom_call.1} parent=1 // pred_fallthru
      _
    %p309 = scmp.ge.s32.totalorder %s253, %s45
    %p310 = scmp.lt.s32.totalorder %s253, %s47
    %p311 = pnand %p309, %p310
    %p312 = pneg %p311
    // Predicated region
    $region46: #{tpu_custom_call.1} parent=1 // pred_check
      _
    $region47: #{tpu_custom_call.1} parent=1 // pred_check_branch
      %314 = sbr.rel (%p311) target = $region49
    $region48: #{tpu_custom_call.1} parent=1 // pred_region
      %s315 = ssub.s32 %s253, %s45
      %v316 = vstv %s254
      %vm317 = vcmp.eq.s32.totalorder %v68, %v316
      %s318 = scalar_lea.vmem [#allocation7], %s315
      %v319 = vld [vmem:[%s318] sm:$0x1]
      %v320 = vsel %vm317, 0.0, %v319
      %321 = vst [vmem:[%s318] sm:$0x1] %v320
      %s322 = smul.u32 %s252, 2
      %s323 = sadd.s32 %s315, %s322
      %s324 = scalar_lea.vmem [#allocation7], %s323
      %v325 = vld [vmem:[%s324] sm:$0x1]
      %v326 = vsel %vm317, 1.0, %v325
      %327 = vst [vmem:[%s324] sm:$0x1] %v326
    $region49: #{tpu_custom_call.1} parent=1 // pred_fallthru
      _
    %s328 = sld [smem:[#allocation2 + $0x1b]]
    %s329 = sld [smem:[#allocation2 + $0x1c]]
    %s330 = sld [smem:[#allocation2 + $0x1d]]
    %s331 = sld [smem:[#allocation2 + $0x1e]]
    %s332 = sld [smem:[#allocation2 + $0x1f]]
    %s333 = sld [smem:[#allocation2 + $0x20]]
    %s334 = sld [smem:[#allocation2 + $0x21]]
    %s335 = sld [smem:[#allocation2 + $0x22]]
    %s336 = sld [smem:[#allocation2 + $0x23]]
    %s337 = sld [smem:[#allocation6 + $0x9]]
    %s338 = sld [smem:[#allocation6 + $0xa]]
    %s339 = sld [smem:[#allocation6 + $0xb]]
    %v340 = vstv %s328
    %vm341 = vcmp.ge.s32.totalorder %v55, %v340
    %v342 = vstv %s330
    %vm343 = vcmp.lt.s32.totalorder %v55, %v342
    %vm344 = vmand %vm341, %vm343
    %v345 = vstv %s329
    %vm346 = vcmp.ge.s32.totalorder %v64, %v345
    %vm347 = vmand %vm344, %vm346
    %v348 = vstv %s331
    %vm349 = vcmp.lt.s32.totalorder %v64, %v348
    %vm350 = vmand %vm347, %vm349
    %v351 = vstv %s332
    %vm352 = vcmp.eq.s32.totalorder %v55, %v351
    %v353 = vstv %s333
    %vm354 = vcmp.eq.s32.totalorder %v64, %v353
    %vm355 = vmand %vm352, %vm354
    %v356 = vstv %s338
    %v357 = vsub.f32 %v65, %v356
    %v358 = vstv %s339
    %v359 = vsub.f32 %v66, %v358
    %v360 = vmul.f32 %v357, %v357
    %v361 = vmul.f32 %v359, %v359
    %v362 = vadd.f32 %v360, %v361
    %v363 = vrsqrt.pop %v362
    %v364 = vmul.f32 %v362, %v363
    %vm365 = vcmp.eq.f32.partialorder %v362, inf
    %v366 = vsel %vm365, %v362, %v364
    %vm367 = vcmp.eq.f32.partialorder %v362, 0.0
    %v368 = vand.u32 %v362, 2147483648
    %v369 = vsel %vm367, %v368, %v366
    %v370 = vstv %s337
    %v371 = vmul.f32 %v369, %v370
    %v372 = vmin.f32 %v371, 1.0
    %v373 = vsel %vm355, 1.0, %v372
    %v374 = vsel %vm350, %v373, 0.0
    %v375 = vmax.f32 %v293, %v374
    %p376 = scmp.gt.s32.totalorder %s331, %s46
    %p377 = scmp.lt.s32.totalorder %s329, %s48
    %p378 = pnand %p376, %p377
    %p379 = pneg %p378
    // Predicated region
    $region50: #{tpu_custom_call.1} parent=1 // pred_check
      _
    $region51: #{tpu_custom_call.1} parent=1 // pred_check_branch
      %381 = sbr.rel (%p378) target = $region53
    $region52: #{tpu_custom_call.1} parent=1 // pred_region
      %s382 = smul.u32 %s334, 2
      %s383 = scalar_lea.vmem [#allocation8], %s382
      %v384 = vld [vmem:[%s383] sm:$0x3]
      %v385 = vmax.f32 %v384, %v374
      %386 = vst [vmem:[%s383] sm:$0x3] %v385
      %s387 = scalar_lea.vmem [#allocation10], %s382
      %v388 = vld [vmem:[%s387] sm:$0x3]
      %v389 = vsel %vm350, 1.0, %v388
      %390 = vst [vmem:[%s387] sm:$0x3] %v389
    $region53: #{tpu_custom_call.1} parent=1 // pred_fallthru
      _
    %p391 = scmp.ge.s32.totalorder %s335, %s45
    %p392 = scmp.lt.s32.totalorder %s335, %s47
    %p393 = pnand %p391, %p392
    %p394 = pneg %p393
    // Predicated region
    $region54: #{tpu_custom_call.1} parent=1 // pred_check
      _
    $region55: #{tpu_custom_call.1} parent=1 // pred_check_branch
      %396 = sbr.rel (%p393) target = $region57
    $region56: #{tpu_custom_call.1} parent=1 // pred_region
      %s397 = ssub.s32 %s335, %s45
      %v398 = vstv %s336
      %vm399 = vcmp.eq.s32.totalorder %v68, %v398
      %s400 = scalar_lea.vmem [#allocation7], %s397
      %v401 = vld [vmem:[%s400] sm:$0x1]
      %v402 = vsel %vm399, 0.0, %v401
      %403 = vst [vmem:[%s400] sm:$0x1] %v402
      %s404 = smul.u32 %s334, 2
      %s405 = sadd.s32 %s397, %s404
      %s406 = scalar_lea.vmem [#allocation7], %s405
      %v407 = vld [vmem:[%s406] sm:$0x1]
      %v408 = vsel %vm399, 1.0, %v407
      %409 = vst [vmem:[%s406] sm:$0x1] %v408
    $region57: #{tpu_custom_call.1} parent=1 // pred_fallthru
      _
    %s410 = sld [smem:[#allocation2 + $0x24]]
    %s411 = sld [smem:[#allocation2 + $0x25]]
    %s412 = sld [smem:[#allocation2 + $0x26]]
    %s413 = sld [smem:[#allocation2 + $0x27]]
    %s414 = sld [smem:[#allocation2 + $0x28]]
    %s415 = sld [smem:[#allocation2 + $0x29]]
    %s416 = sld [smem:[#allocation2 + $0x2a]]
    %s417 = sld [smem:[#allocation2 + $0x2b]]
    %s418 = sld [smem:[#allocation2 + $0x2c]]
    %s419 = sld [smem:[#allocation6 + $0xc]]
    %s420 = sld [smem:[#allocation6 + $0xd]]
    %s421 = sld [smem:[#allocation6 + $0xe]]
    %v422 = vstv %s410
    %vm423 = vcmp.ge.s32.totalorder %v55, %v422
    %v424 = vstv %s412
    %vm425 = vcmp.lt.s32.totalorder %v55, %v424
    %vm426 = vmand %vm423, %vm425
    %v427 = vstv %s411
    %vm428 = vcmp.ge.s32.totalorder %v64, %v427
    %vm429 = vmand %vm426, %vm428
    %v430 = vstv %s413
    %vm431 = vcmp.lt.s32.totalorder %v64, %v430
    %vm432 = vmand %vm429, %vm431
    %v433 = vstv %s414
    %vm434 = vcmp.eq.s32.totalorder %v55, %v433
    %v435 = vstv %s415
    %vm436 = vcmp.eq.s32.totalorder %v64, %v435
    %vm437 = vmand %vm434, %vm436
    %v438 = vstv %s420
    %v439 = vsub.f32 %v65, %v438
    %v440 = vstv %s421
    %v441 = vsub.f32 %v66, %v440
    %v442 = vmul.f32 %v439, %v439
    %v443 = vmul.f32 %v441, %v441
    %v444 = vadd.f32 %v442, %v443
    %v445 = vrsqrt.pop %v444
    %v446 = vmul.f32 %v444, %v445
    %vm447 = vcmp.eq.f32.partialorder %v444, inf
    %v448 = vsel %vm447, %v444, %v446
    %vm449 = vcmp.eq.f32.partialorder %v444, 0.0
    %v450 = vand.u32 %v444, 2147483648
    %v451 = vsel %vm449, %v450, %v448
    %v452 = vstv %s419
    %v453 = vmul.f32 %v451, %v452
    %v454 = vmin.f32 %v453, 1.0
    %v455 = vsel %vm437, 1.0, %v454
    %v456 = vsel %vm432, %v455, 0.0
    %v457 = vmax.f32 %v375, %v456
    %p458 = scmp.gt.s32.totalorder %s413, %s46
    %p459 = scmp.lt.s32.totalorder %s411, %s48
    %p460 = pnand %p458, %p459
    %p461 = pneg %p460
    // Predicated region
    $region58: #{tpu_custom_call.1} parent=1 // pred_check
      _
    $region59: #{tpu_custom_call.1} parent=1 // pred_check_branch
      %463 = sbr.rel (%p460) target = $region61
    $region60: #{tpu_custom_call.1} parent=1 // pred_region
      %s464 = smul.u32 %s416, 2
      %s465 = scalar_lea.vmem [#allocation8], %s464
      %v466 = vld [vmem:[%s465] sm:$0x3]
      %v467 = vmax.f32 %v466, %v456
      %468 = vst [vmem:[%s465] sm:$0x3] %v467
      %s469 = scalar_lea.vmem [#allocation10], %s464
      %v470 = vld [vmem:[%s469] sm:$0x3]
      %v471 = vsel %vm432, 1.0, %v470
      %472 = vst [vmem:[%s469] sm:$0x3] %v471
    $region61: #{tpu_custom_call.1} parent=1 // pred_fallthru
      _
    %p473 = scmp.ge.s32.totalorder %s417, %s45
    %p474 = scmp.lt.s32.totalorder %s417, %s47
    %p475 = pnand %p473, %p474
    %p476 = pneg %p475
    // Predicated region
    $region62: #{tpu_custom_call.1} parent=1 // pred_check
      _
    $region63: #{tpu_custom_call.1} parent=1 // pred_check_branch
      %478 = sbr.rel (%p475) target = $region65
    $region64: #{tpu_custom_call.1} parent=1 // pred_region
      %s479 = ssub.s32 %s417, %s45
      %v480 = vstv %s418
      %vm481 = vcmp.eq.s32.totalorder %v68, %v480
      %s482 = scalar_lea.vmem [#allocation7], %s479
      %v483 = vld [vmem:[%s482] sm:$0x1]
      %v484 = vsel %vm481, 0.0, %v483
      %485 = vst [vmem:[%s482] sm:$0x1] %v484
      %s486 = smul.u32 %s416, 2
      %s487 = sadd.s32 %s479, %s486
      %s488 = scalar_lea.vmem [#allocation7], %s487
      %v489 = vld [vmem:[%s488] sm:$0x1]
      %v490 = vsel %vm481, 1.0, %v489
      %491 = vst [vmem:[%s488] sm:$0x1] %v490
    $region65: #{tpu_custom_call.1} parent=1 // pred_fallthru
      _
    %vm492 = vcmp.gt.f32.partialorder %v457, 0.0
    %v493 = vsel %vm492, 0.0, 1.0
    %494 = vst [vmem:[#allocation10] sm:$0x3] %v493
    %vm495 = vcmp.eq.f32.partialorder %v457, 0.0
    %v496 = vsel %vm495, 1.0, %v457
    %497 = vst [vmem:[#allocation8] sm:$0x3] %v496
    %v498 = vld [vmem:[%s78] sm:$0x3]
    %v499 = vld [vmem:[%s78 + $0x2] sm:$0x3]
    %v500 = vld [vmem:[%s78 + $0x4] sm:$0x3]
    %vm501 = vcmp.eq.f32.partialorder %v498, 0.0
    %vm502 = vcmp.eq.f32.partialorder %v499, 0.0
    %vm503 = vcmp.eq.f32.partialorder %v500, 0.0
    %v504 = vsel %vm501, 1.0, %v498
    %v505 = vsel %vm502, 1.0, %v499
    %v506 = vsel %vm503, 1.0, %v500
    %507 = vst [vmem:[%s78] sm:$0x3] %v504
    %508 = vst [vmem:[%s78 + $0x2] sm:$0x3] %v505
    %509 = vst [vmem:[%s78 + $0x4] sm:$0x3] %v506
    // Predicated region
    $region66: #{tpu_custom_call.1} parent=1 // pred_check
      _
    $region67: #{tpu_custom_call.1} parent=1 // pred_check_branch
      %511 = sbr.rel (0) target = $region69
    $region68: #{tpu_custom_call.1} parent=1 // pred_region
      %s513 = ssub.s32 128, 128
      %514 = vsyncadd [#allocation3], %s513
      %s515 = sshll.u32 [#allocation7], 4
      %s516 = int_to_ptr.vmem [resolvable:$true] %s515
      %521 = dma.vmem_to_hbm [thread:$0]  %s516, 128, %s4, [#allocation3], 32, 32, 2
    $region69: #{tpu_custom_call.1} parent=1 // pred_fallthru
      _
    // Predicated region
    $region70: #{tpu_custom_call.1} parent=1 // pred_check
      _
    $region71: #{tpu_custom_call.1} parent=1 // pred_check_branch
      %523 = sbr.rel (0) target = $region73
    $region72: #{tpu_custom_call.1} parent=1 // pred_region
      %s525 = ssub.s32 128, 128
      %526 = vsyncadd [#allocation9], %s525
      %s527 = sshll.u32 [#allocation8], 4
      %s528 = int_to_ptr.vmem [resolvable:$true] %s527
      %533 = dma.vmem_to_hbm [thread:$0]  %s528, 128, %s5, [#allocation9], 32, 32, 2
    $region73: #{tpu_custom_call.1} parent=1 // pred_fallthru
      _
    // Predicated region
    $region74: #{tpu_custom_call.1} parent=1 // pred_check
      _
    $region75: #{tpu_custom_call.1} parent=1 // pred_check_branch
      %535 = sbr.rel (0) target = $region77
    $region76: #{tpu_custom_call.1} parent=1 // pred_region
      %s537 = ssub.s32 128, 128
      %538 = vsyncadd [#allocation9], %s537
      %s539 = sshll.u32 [#allocation10], 4
      %s540 = int_to_ptr.vmem [resolvable:$true] %s539
      %545 = dma.vmem_to_hbm [thread:$0]  %s540, 128, %s6, [#allocation9], 32, 32, 2
    $region77: #{tpu_custom_call.1} parent=1 // pred_fallthru
      _
    // Predicated region
    $region78: #{tpu_custom_call.1} parent=1 // pred_check
      _
    $region79: #{tpu_custom_call.1} parent=1 // pred_check_branch
      %547 = sbr.rel (0) target = $region81
    $region80: #{tpu_custom_call.1} parent=1 // pred_region
      %548 = dma.done [#allocation3], 128
    $region81: #{tpu_custom_call.1} parent=1 // pred_fallthru
      _
    // Predicated region
    $region82: #{tpu_custom_call.1} parent=1 // pred_check
      _
    $region83: #{tpu_custom_call.1} parent=1 // pred_check_branch
      %550 = sbr.rel (0) target = $region85
    $region84: #{tpu_custom_call.1} parent=1 // pred_region
      %551 = dma.done [#allocation9], 128
    $region85: #{tpu_custom_call.1} parent=1 // pred_fallthru
      _
    // Predicated region
    $region86: #{tpu_custom_call.1} parent=1 // pred_check
      _
    $region87: #{tpu_custom_call.1} parent=1 // pred_check_branch
      %553 = sbr.rel (0) target = $region89
    $region88: #{tpu_custom_call.1} parent=1 // pred_region
      %554 = dma.done [#allocation9], 128
    $region89: #{tpu_custom_call.1} parent=1 // pred_fallthru
      _
    %555 = vsyncpa [#allocation3], 1
    %556 = vsyncpa [#allocation9], 1
    %557 = vsyncpa [#allocation4], 1
    %558 = vsyncpa [#allocation5], 1

</llo_original>
